<compile_context>
chip_gen: v5e
topology: v5e:2x2
jax: 0.10.0
libtpu: 0.0.40
codegen_flags: <defaults>
</compile_context>

<pallas_src>
import math

import jax
import jax.numpy as jnp
from jax.experimental import pallas as pl
from jax.experimental.pallas import tpu as pltpu


def _date_encoding_kernel(freq_ref, phase_ref, embed_ref, dates_ref, out_ref):
    # freq_ref/phase_ref: (1, D, 1) f32  (VMEM-resident constants)
    # embed_ref/out_ref : (1, D, TL)
    # dates_ref         : (1, 1, TL)
    e = embed_ref[...]
    d = dates_ref[...].astype(jnp.float32)            # (1, 1, TL)
    # Outer-product angle + per-row phase; cos rows use phase = pi/2 so a single
    # sin covers both the even (sin) and odd (cos) d_embed rows.
    angle = freq_ref[...] * d + phase_ref[...]        # (1, D, TL) f32
    # TODO(synk): dropout(p=0.2) is applied in PyTorch training mode; here we
    # implement eval-mode (identity) dropout.
    out_ref[...] = e + jnp.sin(angle).astype(e.dtype)


def _precompute_tables(d_embed):
    """freq[d] = exp(-(ln 1e4)/D * (d - d%2)), phase[d] = (d%2) * pi/2."""
    rows = jnp.arange(d_embed, dtype=jnp.int32)
    parity = rows & 1                                  # int parity (cheap, exact)
    even_rows = (rows - parity).astype(jnp.float32)
    freq = jnp.exp(even_rows * (-math.log(10000.0) / d_embed))
    phase = parity.astype(jnp.float32) * (math.pi / 2.0)
    return (freq.reshape(1, d_embed, 1),
            phase.reshape(1, d_embed, 1))


def _pick_l_tile(L):
    """Largest lane-dense tile (multiple of 128, <=512) dividing L, else full L."""
    if L % 128 == 0:
        for tl in (512, 384, 256, 128):
            if L % tl == 0:
                return tl
    return L  # full-extent block is always legal


def date_encoding(embed, dates):
    """embed: [B, d_embed, L] float, dates: [B, 1, L] float."""
    B, D, L = embed.shape
    assert dates.shape == (B, 1, L)
    freq, phase = _precompute_tables(D)
    tl = _pick_l_tile(L)
    n_l = L // tl

    return pl.pallas_call(
        _date_encoding_kernel,
        out_shape=jax.ShapeDtypeStruct((B, D, L), embed.dtype),
        grid_spec=pltpu.PrefetchScalarGridSpec(
            num_scalar_prefetch=0,
            grid=(B, n_l),
            in_specs=[
                # Constant-index blocks: DMA'd once, reused across all steps.
                pl.BlockSpec((1, D, 1), lambda b, l: (0, 0, 0)),    # freq
                pl.BlockSpec((1, D, 1), lambda b, l: (0, 0, 0)),    # phase
                pl.BlockSpec((1, D, tl), lambda b, l: (b, 0, l)),   # embed
                pl.BlockSpec((1, 1, tl), lambda b, l: (b, 0, l)),   # dates
            ],
            out_specs=pl.BlockSpec((1, D, tl), lambda b, l: (b, 0, l)),
        ),
        compiler_params=pltpu.CompilerParams(
            dimension_semantics=("parallel", "parallel"),
        ),
    )(freq, phase, embed, dates)


def _reference(embed, dates):
    """Pure-JAX reference matching the PyTorch forward (eval mode)."""
    B, D, L = embed.shape
    half = jnp.exp(jnp.arange(0, D, 2, dtype=jnp.float32) *
                   (-math.log(10000.0) / D))            # (D/2,)
    angle = half[None, :, None] * dates                 # (B, D/2, L) == bmm result
    pe = jnp.zeros_like(embed)
    pe = pe.at[:, 0::2, :].set(jnp.sin(angle))
    pe = pe.at[:, 1::2, :].set(jnp.cos(angle))
    return embed + pe


if __name__ == "__main__":
    # Small but lane-dense demo shapes (L a multiple of 128 keeps stores unmasked).
    B, D, L = 2, 32, 256
    key = jax.random.PRNGKey(0)
    k1, k2 = jax.random.split(key)
    embed = jax.random.normal(k1, (B, D, L), dtype=jnp.float32)
    # "dates" are arbitrary positive positions/timestamps (ReferLen = 1200).
    dates = jax.random.uniform(k2, (B, 1, L), dtype=jnp.float32,
                               minval=0.0, maxval=1200.0)

    out = date_encoding(embed, dates)
    out = jax.block_until_ready(out)

    ref = _reference(embed, dates)
    assert out.shape == (B, D, L)
    # cos(x) is computed as sin(x + pi/2); for x ~ 1200 the f32 rounding of the
    # +pi/2 add perturbs the argument by up to ~0.5 ulp(1200) ~ 6e-5, so compare
    # with a tolerance above that (still far below any PE-relevant precision).
    assert jnp.allclose(out, ref, atol=5e-4, rtol=1e-5), "mismatch vs reference"

    print("KERNEL_OK")
</pallas_src>

<mosaic_0001>
module attributes {stable_mosaic.version = 11 : i64} {
  func.func @_date_encoding_kernel(%arg0: i32, %arg1: i32, %arg2: memref<1x32x1xf32, #tpu.memory_space<vmem>>, %arg3: memref<1x32x1xf32, #tpu.memory_space<vmem>>, %arg4: memref<1x32x256xf32, #tpu.memory_space<vmem>>, %arg5: memref<1x1x256xf32, #tpu.memory_space<vmem>>, %arg6: memref<1x32x256xf32, #tpu.memory_space<vmem>>) attributes {dimension_semantics = [#tpu.dimension_semantics<parallel>, #tpu.dimension_semantics<parallel>], iteration_bounds = array<i64: 2, 1>, scalar_prefetch = 0 : i64, scratch_operands = 0 : i64, tpu.core_type = #tpu.core_type<tc>, window_params = [{pipeline_mode = #tpu.pipeline_mode<synchronous>, transform_indices = @transform_0, window_bounds = array<i64: 1, 32, 1>}, {pipeline_mode = #tpu.pipeline_mode<synchronous>, transform_indices = @transform_1, window_bounds = array<i64: 1, 32, 1>}, {transform_indices = @transform_2, window_bounds = array<i64: 1, 32, 256>}, {transform_indices = @transform_3, window_bounds = array<i64: 1, 1, 256>}, {transform_indices = @transform_4, window_bounds = array<i64: 1, 32, 256>}]} {
    %c0 = arith.constant 0 : index
    %c0_0 = arith.constant 0 : index
    %c0_1 = arith.constant 0 : index
    %0 = vector.load %arg4[%c0, %c0_0, %c0_1] : memref<1x32x256xf32, #tpu.memory_space<vmem>>, vector<1x32x256xf32>
    %c0_2 = arith.constant 0 : index
    %c0_3 = arith.constant 0 : index
    %c0_4 = arith.constant 0 : index
    %1 = vector.load %arg5[%c0_2, %c0_3, %c0_4] : memref<1x1x256xf32, #tpu.memory_space<vmem>>, vector<1x1x256xf32>
    %c0_5 = arith.constant 0 : index
    %c0_6 = arith.constant 0 : index
    %c0_7 = arith.constant 0 : index
    %2 = vector.load %arg2[%c0_5, %c0_6, %c0_7] : memref<1x32x1xf32, #tpu.memory_space<vmem>>, vector<1x32x1xf32>
    %3 = vector.broadcast %2 : vector<1x32x1xf32> to vector<1x32x256xf32>
    %4 = vector.broadcast %1 : vector<1x1x256xf32> to vector<1x32x256xf32>
    %5 = arith.mulf %3, %4 : vector<1x32x256xf32>
    %c0_8 = arith.constant 0 : index
    %c0_9 = arith.constant 0 : index
    %c0_10 = arith.constant 0 : index
    %6 = vector.load %arg3[%c0_8, %c0_9, %c0_10] : memref<1x32x1xf32, #tpu.memory_space<vmem>>, vector<1x32x1xf32>
    %7 = vector.broadcast %6 : vector<1x32x1xf32> to vector<1x32x256xf32>
    %8 = arith.addf %5, %7 : vector<1x32x256xf32>
    %9 = math.sin %8 : vector<1x32x256xf32>
    %10 = arith.addf %0, %9 : vector<1x32x256xf32>
    %c0_11 = arith.constant 0 : index
    %c0_12 = arith.constant 0 : index
    %c0_13 = arith.constant 0 : index
    %11 = vector.load %arg6[%c0_11, %c0_12, %c0_13] : memref<1x32x256xf32, #tpu.memory_space<vmem>>, vector<1x32x256xf32>
    tpu.vector_store %arg6[%c0_11, %c0_12, %c0_13], %10 {strides = array<i32>} : memref<1x32x256xf32, #tpu.memory_space<vmem>>, vector<1x32x256xf32>,
    return
  }
  func.func @transform_0(%arg0: i32, %arg1: i32) -> (i32, i32, i32) {
    %c0_i32 = arith.constant 0 : i32
    %c0_i32_0 = arith.constant 0 : i32
    %c0_i32_1 = arith.constant 0 : i32
    %c0_i32_2 = arith.constant 0 : i32
    return %c0_i32, %c0_i32_0, %c0_i32_1 : i32, i32, i32
  }
  func.func @transform_1(%arg0: i32, %arg1: i32) -> (i32, i32, i32) {
    %c0_i32 = arith.constant 0 : i32
    %c0_i32_0 = arith.constant 0 : i32
    %c0_i32_1 = arith.constant 0 : i32
    %c0_i32_2 = arith.constant 0 : i32
    return %c0_i32, %c0_i32_0, %c0_i32_1 : i32, i32, i32
  }
  func.func @transform_2(%arg0: i32, %arg1: i32) -> (i32, i32, i32) {
    %c0_i32 = arith.constant 0 : i32
    %c0_i32_0 = arith.constant 0 : i32
    return %arg0, %c0_i32, %arg1 : i32, i32, i32
  }
  func.func @transform_3(%arg0: i32, %arg1: i32) -> (i32, i32, i32) {
    %c0_i32 = arith.constant 0 : i32
    %c0_i32_0 = arith.constant 0 : i32
    return %arg0, %c0_i32, %arg1 : i32, i32, i32
  }
  func.func @transform_4(%arg0: i32, %arg1: i32) -> (i32, i32, i32) {
    %c0_i32 = arith.constant 0 : i32
    %c0_i32_0 = arith.constant 0 : i32
    return %arg0, %c0_i32, %arg1 : i32, i32, i32
  }
}

</mosaic_0001>

<llo_original>
// kernel: tpu_custom_call.1
$region0: #{tpu_custom_call.1}
  #allocation0 [shape = 'u32[]', space=smem, size = 0x4, offset = 0x4, fixed_abs, tag = 'smem constant byte address 0x4 - core index']
  #allocation1 [shape = 'u32[72,128]{1,0:T(1,128)}', space=vmem, size = 0x9000, scoped, tag = 'internal scratch']
  %s0 = inlined_call_operand.vmem [shape: f32[1,32,1], index: 0, kind: input, shape index: {}]
  %s1 = inlined_call_operand.vmem [shape: f32[1,32,1], index: 1, kind: input, shape index: {}]
  %s2 = inlined_call_operand.hbm [shape: f32[2,32,256], index: 2, kind: input, shape index: {}]
  %s3 = inlined_call_operand.vmem [shape: f32[2,1,256], index: 3, kind: input, shape index: {}]
  %s4 = inlined_call_operand.hbm [shape: f32[2,32,256], index: 4, kind: output, shape index: {}]
  %s5 = sld [smem:[#allocation0]]
  $region53: #{tpu_custom_call.1} parent=0
    _
  %s7 = ssub.s32 1, %s5
  %s8 = scalar_select 0, %s7, %s5
  $region1: #{tpu_custom_call.1} parent=0
    #allocation2 [shape = 'u8[65536]{0}', space=vmem, size = 0x10000, scoped, tag = 'input window, operand 2']
    #allocation3 [shape = 's32[2]{0}', space=sflag, size = 0x8, scoped, tag = 'scoped memory for tpu_custom_call.1']
    #allocation4 [shape = 's32[2]{0}', space=sflag, size = 0x8, scoped, tag = 'scoped memory for tpu_custom_call.1']
    #allocation5 [shape = 'u8[65536]{0}', space=vmem, size = 0x10000, scoped, tag = 'output window, operand 0']
    %9 = vsyncpa [#allocation3], 0
    %s10 = scalar_lea.sflag [#allocation3], 1
    %11 = vsyncpa %s10, 0
    %12 = vsyncpa [#allocation4], 0
    %s13 = scalar_lea.sflag [#allocation4], 1
    %14 = vsyncpa %s13, 0
    loop: start=0, step=1, limit=4
    $region2: #{tpu_custom_call.1} parent=1 // loop_pre_header
      _
    $region3: #{tpu_custom_call.1} parent=1 // loop_header
      %s16 = sphi 0, %s20
      %p17 = scmp.ge.s32.totalorder %s16, 4
      %s23 = sphi 0, %s35
      %s24 = sphi 0, %s31
      %s25 = sphi 0, %s23
      %s26 = sphi 0, %s24
      %s27 = sphi 0, %s25
      %s28 = sphi 0, %s26
      %s36 = sphi 0, %s36
      %s38 = sphi 0, %s36
      %s39 = sphi 0, %s38
      %s53 = sphi 0, %s39
      %s57 = sphi 0, %s57
      %s59 = sphi 0, %s57
      %s60 = sphi 0, %s59
      %s74 = sphi 0, %s60
      %s82 = sphi 0, %s84
      %s85 = sphi 0, %s82
      %s86 = sphi 0, %s85
      %s102 = sphi 0, %s86
      %s110 = sphi 0, %s112
      %s113 = sphi 0, %s110
      %s114 = sphi 0, %s113
      %s130 = sphi 0, %s114
      %s138 = sphi 0, %s140
      %s141 = sphi 0, %s138
      %s142 = sphi 0, %s141
      %s158 = sphi 0, %s142
    $region4: #{tpu_custom_call.1} parent=1 // loop_header_branch
      %19 = sbr.rel (%p17) target = $region8
    $region5: #{tpu_custom_call.1} parent=1 // loop_body
      %s21 = ssub.s32 %s16, 1
      %s22 = ssub.s32 %s16, 2
      %s29 = sadd.s32 1, %s24
      %p30 = scmp.ge.s32.totalorder %s29, 1
      %s31 = scalar_select %p30, 0, %s29
      %s32 = sadd.s32 1, %s23
      %s33 = scalar_select %p30, %s32, %s23
      %p34 = scmp.ge.s32.totalorder %s33, 2
      %s35 = scalar_select %p34, 0, %s33
      %s37 = sadd.s32 %s36, 1
      %p40 = scmp.eq.s32.totalorder %s16, 1
      %p41 = scmp.ne.s32.totalorder %s36, %s38
      %p42 = scmp.eq.s32.totalorder %s16, 0
      %p43 = por %p41, %p42
      %p44 = scmp.ne.s32.totalorder %s36, %s38
      %p45 = scmp.eq.s32.totalorder %s21, 1
      %p46 = por %p44, %p45
      %p47 = scmp.ne.s32.totalorder %s38, %s39
      %p48 = scmp.eq.s32.totalorder %s21, 0
      %p49 = por %p47, %p48
      %p50 = scmp.ne.s32.totalorder %s38, %s39
      %p51 = scmp.eq.s32.totalorder %s22, 1
      %p52 = por %p50, %p51
      %p54 = scmp.ne.s32.totalorder %s39, %s53
      %p55 = scmp.eq.s32.totalorder %s22, 0
      %p56 = por %p54, %p55
      %s58 = sadd.s32 %s57, 1
      %p61 = scmp.eq.s32.totalorder %s16, 1
      %p62 = scmp.ne.s32.totalorder %s57, %s59
      %p63 = scmp.eq.s32.totalorder %s16, 0
      %p64 = por %p62, %p63
      %p65 = scmp.ne.s32.totalorder %s57, %s59
      %p66 = scmp.eq.s32.totalorder %s21, 1
      %p67 = por %p65, %p66
      %p68 = scmp.ne.s32.totalorder %s59, %s60
      %p69 = scmp.eq.s32.totalorder %s21, 0
      %p70 = por %p68, %p69
      %p71 = scmp.ne.s32.totalorder %s59, %s60
      %p72 = scmp.eq.s32.totalorder %s22, 1
      %p73 = por %p71, %p72
      %p75 = scmp.ne.s32.totalorder %s60, %s74
      %p76 = scmp.eq.s32.totalorder %s22, 0
      %p77 = por %p75, %p76
      %s78 = ssub.s32 %s23, %s35
      %s79 = ssub.s32 %s24, %s31
      %s80 = sor.u32 %s78, %s79
      %p81 = scmp.eq.s32.totalorder %s80, 0
      %s83 = sadd.s32 %s82, 1
      %s84 = scalar_select %p81, %s82, %s83
      %p87 = pneg %p81
      %p88 = scmp.eq.s32.totalorder %s16, 1
      %p89 = por %p87, %p88
      %p90 = scmp.ne.s32.totalorder %s82, %s85
      %p91 = scmp.eq.s32.totalorder %s16, 0
      %p92 = por %p90, %p91
      %p93 = scmp.ne.s32.totalorder %s82, %s85
      %p94 = scmp.eq.s32.totalorder %s21, 1
      %p95 = por %p93, %p94
      %p96 = scmp.ne.s32.totalorder %s85, %s86
      %p97 = scmp.eq.s32.totalorder %s21, 0
      %p98 = por %p96, %p97
      %p99 = scmp.ne.s32.totalorder %s85, %s86
      %p100 = scmp.eq.s32.totalorder %s22, 1
      %p101 = por %p99, %p100
      %p103 = scmp.ne.s32.totalorder %s86, %s102
      %p104 = scmp.eq.s32.totalorder %s22, 0
      %p105 = por %p103, %p104
      %s106 = ssub.s32 %s23, %s35
      %s107 = ssub.s32 %s24, %s31
      %s108 = sor.u32 %s106, %s107
      %p109 = scmp.eq.s32.totalorder %s108, 0
      %s111 = sadd.s32 %s110, 1
      %s112 = scalar_select %p109, %s110, %s111
      %p115 = pneg %p109
      %p116 = scmp.eq.s32.totalorder %s16, 1
      %p117 = por %p115, %p116
      %p118 = scmp.ne.s32.totalorder %s110, %s113
      %p119 = scmp.eq.s32.totalorder %s16, 0
      %p120 = por %p118, %p119
      %p121 = scmp.ne.s32.totalorder %s110, %s113
      %p122 = scmp.eq.s32.totalorder %s21, 1
      %p123 = por %p121, %p122
      %p124 = scmp.ne.s32.totalorder %s113, %s114
      %p125 = scmp.eq.s32.totalorder %s21, 0
      %p126 = por %p124, %p125
      %p127 = scmp.ne.s32.totalorder %s113, %s114
      %p128 = scmp.eq.s32.totalorder %s22, 1
      %p129 = por %p127, %p128
      %p131 = scmp.ne.s32.totalorder %s114, %s130
      %p132 = scmp.eq.s32.totalorder %s22, 0
      %p133 = por %p131, %p132
      %s134 = ssub.s32 %s23, %s35
      %s135 = ssub.s32 %s24, %s31
      %s136 = sor.u32 %s134, %s135
      %p137 = scmp.eq.s32.totalorder %s136, 0
      %s139 = sadd.s32 %s138, 1
      %s140 = scalar_select %p137, %s138, %s139
      %p143 = pneg %p137
      %p144 = scmp.eq.s32.totalorder %s16, 1
      %p145 = por %p143, %p144
      %p146 = scmp.ne.s32.totalorder %s138, %s141
      %p147 = scmp.eq.s32.totalorder %s16, 0
      %p148 = por %p146, %p147
      %p149 = scmp.ne.s32.totalorder %s138, %s141
      %p150 = scmp.eq.s32.totalorder %s21, 1
      %p151 = por %p149, %p150
      %p152 = scmp.ne.s32.totalorder %s141, %s142
      %p153 = scmp.eq.s32.totalorder %s21, 0
      %p154 = por %p152, %p153
      %p155 = scmp.ne.s32.totalorder %s141, %s142
      %p156 = scmp.eq.s32.totalorder %s22, 1
      %p157 = por %p155, %p156
      %p159 = scmp.ne.s32.totalorder %s142, %s158
      %p160 = scmp.eq.s32.totalorder %s22, 0
      %p161 = por %p159, %p160
      %p162 = scmp.le.s32.totalorder 1, %s16
      %p163 = scmp.lt.s32.totalorder %s16, 3
      %p164 = pnand %p162, %p163
      %p165 = pneg %p164
      // Predicated region
      $region9: #{tpu_custom_call.1} parent=5 // pred_check
        _
      $region10: #{tpu_custom_call.1} parent=5 // pred_check_branch
        %167 = sbr.rel (%p164) target = $region12
      $region11: #{tpu_custom_call.1} parent=5 // pred_region
        %s168 = ssub.s32 %s16, 1
        // Predicated region
        $region13: #{tpu_custom_call.1} parent=11 // pred_check
          %p169 = pneg %p49
        $region14: #{tpu_custom_call.1} parent=11 // pred_check_branch
          %171 = sbr.rel (%p169) target = $region16
        $region15: #{tpu_custom_call.1} parent=11 // pred_region
          _
        $region16: #{tpu_custom_call.1} parent=11 // pred_fallthru
          _
        // Predicated region
        $region17: #{tpu_custom_call.1} parent=11 // pred_check
          %p172 = pneg %p70
        $region18: #{tpu_custom_call.1} parent=11 // pred_check_branch
          %174 = sbr.rel (%p172) target = $region20
        $region19: #{tpu_custom_call.1} parent=11 // pred_region
          _
        $region20: #{tpu_custom_call.1} parent=11 // pred_fallthru
          _
      $region12: #{tpu_custom_call.1} parent=5 // pred_fallthru
        _
      %p175 = scmp.lt.s32.totalorder %s16, 2
      // Predicated region
      $region21: #{tpu_custom_call.1} parent=5 // pred_check
        %p176 = pneg %p175
      $region22: #{tpu_custom_call.1} parent=5 // pred_check_branch
        %178 = sbr.rel (%p176) target = $region24
      $region23: #{tpu_custom_call.1} parent=5 // pred_region
        // Predicated region
        $region25: #{tpu_custom_call.1} parent=23 // pred_check
          %p179 = pneg %p92
        $region26: #{tpu_custom_call.1} parent=23 // pred_check_branch
          %181 = sbr.rel (%p179) target = $region28
        $region27: #{tpu_custom_call.1} parent=23 // pred_region
          %s182 = sand.u32 %s82, 1
          %s183 = scalar_lea.sflag [#allocation3], %s182
          %s184 = sand.u32 %s82, 1
          %s185 = smul.addr %s184, 64
          %s186 = scalar_lea.vmem [#allocation2], %s185
          %s187 = smul.u32 2, %s24
          %189 = vsyncadd %s183, 0
          %s190 = smul.addr %s23, 8
          %s191 = sadd.s32 %s187, %s190
          %s192 = smul.addr %s191, 8
          %s193 = scalar_lea.hbm %s2, %s192
          %s194 = sshll.u32 %s193, 4
          %s195 = int_to_ptr.hbm [resolvable:$true] %s194
          %s196 = sshll.u32 %s186, 4
          %s197 = int_to_ptr.vmem [resolvable:$true] %s196
          %202 = dma.hbm_to_vmem [thread:$0]  %s195, 1024, %s197, %s183, 256, 256, 16
        $region28: #{tpu_custom_call.1} parent=23 // pred_fallthru
          _
        // Predicated region
        $region29: #{tpu_custom_call.1} parent=23 // pred_check
          %p203 = pneg %p120
        $region30: #{tpu_custom_call.1} parent=23 // pred_check_branch
          %205 = sbr.rel (%p203) target = $region32
        $region31: #{tpu_custom_call.1} parent=23 // pred_region
          %s206 = smul.u32 2, %s24
          %p207 = scmp.lt.s32.totalorder %s23, 1
          %s208 = scalar_select %p207, %s23, 1
          %p209 = scmp.lt.s32.totalorder %s206, 1
          %s210 = scalar_select %p209, %s206, 1
          %s211 = smul.addr %s208, 2
          %s212 = sadd.s32 %s210, %s211
          %s213 = scalar_lea.vmem %s3, %s212
          %s214 = smul.u32 2, %s24
        $region32: #{tpu_custom_call.1} parent=23 // pred_fallthru
          _
      $region24: #{tpu_custom_call.1} parent=5 // pred_fallthru
        _
      %p215 = scmp.le.s32.totalorder 1, %s16
      %p216 = scmp.lt.s32.totalorder %s16, 3
      %p217 = pnand %p215, %p216
      %p218 = pneg %p217
      // Predicated region
      $region33: #{tpu_custom_call.1} parent=5 // pred_check
        _
      $region34: #{tpu_custom_call.1} parent=5 // pred_check_branch
        %220 = sbr.rel (%p217) target = $region36
      $region35: #{tpu_custom_call.1} parent=5 // pred_region
        %s221 = ssub.s32 %s16, 1
        %s222 = sand.u32 %s85, 1
        %s223 = scalar_lea.sflag [#allocation3], %s222
        %s224 = sand.u32 %s85, 1
        %s225 = smul.addr %s224, 64
        %s226 = scalar_lea.vmem [#allocation2], %s225
        // Predicated region
        $region37: #{tpu_custom_call.1} parent=35 // pred_check
          %p227 = pneg %p98
        $region38: #{tpu_custom_call.1} parent=35 // pred_check_branch
          %229 = sbr.rel (%p227) target = $region40
        $region39: #{tpu_custom_call.1} parent=35 // pred_region
          %231 = dma.done %s223, 1024
        $region40: #{tpu_custom_call.1} parent=35 // pred_fallthru
          _
        %p232 = pneg %p49
        %p233 = pneg %p46
        %p234 = pneg %p70
        %p235 = pneg %p67
        %s236 = sand.u32 %s85, 1
        %s237 = scalar_lea.sflag [#allocation3], %s236
        %s238 = sand.u32 %s85, 1
        %s239 = smul.addr %s238, 64
        %s240 = scalar_lea.vmem [#allocation2], %s239
        %p241 = pneg %p98
        %p242 = pneg %p95
        %s243 = smul.u32 2, %s26
        %p244 = scmp.lt.s32.totalorder %s25, 1
        %s245 = scalar_select %p244, %s25, 1
        %p246 = scmp.lt.s32.totalorder %s243, 1
        %s247 = scalar_select %p246, %s243, 1
        %s248 = smul.addr %s245, 2
        %s249 = sadd.s32 %s247, %s248
        %s250 = scalar_lea.vmem %s3, %s249
        %p251 = pneg %p126
        %p252 = pneg %p123
        %p253 = pneg %p154
        %p254 = pneg %p151
        %s255 = sand.u32 %s141, 1
        %s256 = scalar_lea.sflag [#allocation4], %s255
        %s257 = sand.u32 %s141, 1
        %s258 = smul.addr %s257, 64
        %s259 = scalar_lea.vmem [#allocation5], %s258
        %s260 = smul.u32 2, %s26
        %s261 = smul.u32 2, %s26
        %p262 = scmp.lt.s32.totalorder %s25, 1
        %s263 = scalar_select %p262, %s25, 1
        %p264 = scmp.lt.s32.totalorder %s261, 1
        %s265 = scalar_select %p264, %s261, 1
        %s266 = smul.addr %s263, 2
        %s267 = sadd.s32 %s265, %s266
        %s268 = scalar_lea.vmem %s3, %s267
        %s269 = smul.u32 2, %s26
        %s270 = smul.u32 2, %s26
        %v271 = vld [vmem:[%s226] sm:$0xff]
        %v272 = vld [vmem:[%s226 + $0x8] sm:$0xff]
        %v273 = vld [vmem:[%s226 + $0x10] sm:$0xff]
        %v274 = vld [vmem:[%s226 + $0x18] sm:$0xff]
        %v275 = vld [vmem:[%s226 + $0x20] sm:$0xff]
        %v276 = vld [vmem:[%s226 + $0x28] sm:$0xff]
        %v277 = vld [vmem:[%s226 + $0x30] sm:$0xff]
        %v278 = vld [vmem:[%s226 + $0x38] sm:$0xff]
        %v279 = vld [vmem:[%s268] sm:$0x3]
        %v280 = vld [vmem:[%s0] sm:$0xff]
        %v281 = vld [vmem:[%s0 + $0x8] sm:$0xff]
        %v282 = vld [vmem:[%s0 + $0x10] sm:$0xff]
        %v283 = vld [vmem:[%s0 + $0x18] sm:$0xff]
        %285 = vset.pattern.permute.xlu0 0
        %286 = vperm.xlu0 %285, %v280
        %v287 = vpop.permute.xlu0 %286
        %290 = vset.pattern.permute.xlu0 0
        %291 = vperm.xlu0 %290, %v281
        %v292 = vpop.permute.xlu0 %291
        %295 = vset.pattern.permute.xlu0 0
        %296 = vperm.xlu0 %295, %v282
        %v297 = vpop.permute.xlu0 %296
        %300 = vset.pattern.permute.xlu0 0
        %301 = vperm.xlu0 %300, %v283
        %v302 = vpop.permute.xlu0 %301
        %v305 = vperm.slane %v279, 0
        %v306 = vperm.slane %v279, 1
        %v309 = vmul.f32 %v287, %v305
        %v310 = vmul.f32 %v287, %v306
        %v311 = vmul.f32 %v292, %v305
        %v312 = vmul.f32 %v292, %v306
        %v313 = vmul.f32 %v297, %v305
        %v314 = vmul.f32 %v297, %v306
        %v315 = vmul.f32 %v302, %v305
        %v316 = vmul.f32 %v302, %v306
        %v317 = vld [vmem:[%s1] sm:$0xff]
        %v318 = vld [vmem:[%s1 + $0x8] sm:$0xff]
        %v319 = vld [vmem:[%s1 + $0x10] sm:$0xff]
        %v320 = vld [vmem:[%s1 + $0x18] sm:$0xff]
        %322 = vset.pattern.permute.xlu0 0
        %323 = vperm.xlu0 %322, %v317
        %v324 = vpop.permute.xlu0 %323
        %327 = vset.pattern.permute.xlu0 0
        %328 = vperm.xlu0 %327, %v318
        %v329 = vpop.permute.xlu0 %328
        %332 = vset.pattern.permute.xlu0 0
        %333 = vperm.xlu0 %332, %v319
        %v334 = vpop.permute.xlu0 %333
        %337 = vset.pattern.permute.xlu0 0
        %338 = vperm.xlu0 %337, %v320
        %v339 = vpop.permute.xlu0 %338
        %v341 = vadd.f32 %v309, %v324
        %v342 = vadd.f32 %v310, %v324
        %v343 = vadd.f32 %v311, %v329
        %v344 = vadd.f32 %v312, %v329
        %v345 = vadd.f32 %v313, %v334
        %v346 = vadd.f32 %v314, %v334
        %v347 = vadd.f32 %v315, %v339
        %v348 = vadd.f32 %v316, %v339
        %v349 = vand.u32 2147483647, %v341
        %vm350 = vcmp.le.f32.partialorder %v349, 0.7853982
        %vm351 = vcmp.lt.s32.totalorder %v341, 0
        %v352 = vand.u32 %v341, 2139095040
        %v353 = vshrl.u32 %v352, 23
        %v354 = vsub.s32 %v353, 127
        %v355 = vand.u32 2147483647, %v341
        %v356 = vand.u32 %v355, 8388607
        %v357 = vor.u32 %v356, 8388608
        %v358 = vsub.s32 0, %v357
        %v359 = vadd.s32 %v354, 1
        %vm360 = vcmp.gt.s32.totalorder %v359, 0
        %v361 = vsel %vm360, %v359, 0
        %v362 = vshrl.u32 %v361, 5
        %v363 = vand.u32 %v361, 31
        %v364 = vsub.s32 32, %v363
        %v365 = vshrl.u32 683565275, %v364
        %v366 = vshll.u32 683565275, %v363
        %v367 = vshrl.u32 2475754826, %v364
        %v368 = vor.u32 %v366, %v367
        %v369 = vshll.u32 2475754826, %v363
        %v370 = vshrl.u32 2131351028, %v364
        %v371 = vor.u32 %v369, %v370
        %v372 = vshll.u32 2131351028, %v363
        %v373 = vshrl.u32 2102212464, %v364
        %v374 = vor.u32 %v372, %v373
        %v375 = vshll.u32 2102212464, %v363
        %v376 = vshrl.u32 920167782, %v364
        %v377 = vor.u32 %v375, %v376
        %v378 = vshll.u32 920167782, %v363
        %v379 = vshrl.u32 1326507024, %v364
        %v380 = vor.u32 %v378, %v379
        %vm381 = vcmp.lt.s32.totalorder %v362, 1
        %vm382 = vcmp.lt.s32.totalorder %v362, 2
        %vm383 = vcmp.lt.s32.totalorder %v362, 3
        %vm384 = vcmp.lt.s32.totalorder %v362, 4
        %v385 = vsel %vm381, %v365, %v368
        %v386 = vsel %vm384, %v374, 2102212464
        %v387 = vsel %vm383, %v371, %v386
        %v388 = vsel %vm382, %v385, %v387
        %v389 = vsel %vm381, %v368, %v371
        %v390 = vsel %vm384, %v377, 920167782
        %v391 = vsel %vm383, %v374, %v390
        %v392 = vsel %vm382, %v389, %v391
        %v393 = vsel %vm381, %v371, %v374
        %v394 = vsel %vm384, %v380, 1326507024
        %v395 = vsel %vm383, %v377, %v394
        %v396 = vsel %vm382, %v393, %v395
        %v397 = vshll.u32 %v357, 8
        %v398 = vand.u32 %v397, 65535
        %v399 = vshrl.u32 %v397, 16
        %v400 = vand.u32 %v396, 65535
        %v401 = vshrl.u32 %v396, 16
        %v402 = vmul.u32 %v398, %v400
        %v403 = vmul.u32 %v398, %v401
        %v404 = vmul.u32 %v399, %v400
        %v405 = vmul.u32 %v399, %v401
        %v406 = vshll.u32 %v403, 16
        %v407 = vshrl.u32 %v403, 16
        %v408 = vshll.u32 %v404, 16
        %v409 = vshrl.u32 %v404, 16
        %vm410 = vc.u32 %v402, %v406
        %v411 = vsel %vm410, 1, 0
        %v412 = vadd.s32 %v402, %v406
        %v413 = vadd.s32 %v405, %v411
        %vm414 = vc.u32 %v412, %v408
        %v415 = vsel %vm414, 1, 0
        %v416 = vadd.s32 %v412, %v408
        %v417 = vadd.s32 %v413, %v415
        %v418 = vadd.s32 %v417, %v407
        %v419 = vadd.s32 %v418, %v409
        %v420 = vand.u32 %v397, 65535
        %v421 = vshrl.u32 %v397, 16
        %v422 = vand.u32 %v392, 65535
        %v423 = vshrl.u32 %v392, 16
        %v424 = vmul.u32 %v420, %v422
        %v425 = vmul.u32 %v420, %v423
        %v426 = vmul.u32 %v421, %v422
        %v427 = vmul.u32 %v421, %v423
        %v428 = vshll.u32 %v425, 16
        %v429 = vshrl.u32 %v425, 16
        %v430 = vshll.u32 %v426, 16
        %v431 = vshrl.u32 %v426, 16
        %vm432 = vc.u32 %v424, %v428
        %v433 = vsel %vm432, 1, 0
        %v434 = vadd.s32 %v424, %v428
        %v435 = vadd.s32 %v427, %v433
        %vm436 = vc.u32 %v434, %v430
        %v437 = vsel %vm436, 1, 0
        %v438 = vadd.s32 %v434, %v430
        %v439 = vadd.s32 %v435, %v437
        %v440 = vadd.s32 %v439, %v429
        %v441 = vadd.s32 %v440, %v431
        %v442 = vmul.u32 %v397, %v388
        %v443 = vadd.s32 %v419, %v438
        %vm444 = vc.u32 %v419, %v438
        %v445 = vadd.s32 %v441, 1
        %v446 = vsel %vm444, %v445, %v441
        %v447 = vadd.s32 %v442, %v446
        %v448 = vadd.s32 %v447, 536870912
        %v449 = vshrl.u32 %v448, 30
        %v450 = vshll.u32 %v449, 30
        %v451 = vsub.s32 %v447, %v450
        %vm452 = vcmp.lt.s32.totalorder %v451, 0
        %v453 = vsub.s32 0, %v451
        %v454 = vsel %vm452, %v453, %v451
        %v455 = vclz %v454
        %v456 = vsub.s32 %v455, 2
        %vm457 = vcmp.gt.s32.totalorder 0, %v456
        %v458 = vsel %vm457, 0, %v456
        %v459 = vsub.s32 32, %v458
        %v460 = vshll.u32 %v451, %v458
        %v461 = vshrl.u32 %v443, %v459
        %v462 = vor.u32 %v460, %v461
        %v463 = vsub.s32 4294967266, %v458
        %v464 = vadd.s32 %v463, 127
        %v465 = vshll.u32 %v464, 23
        %v466 = vor.u32 4788187, %v465
        %v467 = vand.u32 2147483647, %v466
        %v469 = vcvt.s32.f32 %v462
        %v470 = vmul.f32 %v469, %v467
        %v471 = vxor.u32 %v470, 2147483648
        %v472 = vsel %vm351, %v471, %v470
        %v473 = vsub.s32 4, %v449
        %v474 = vsel %vm351, %v473, %v449
        %v475 = vsel %vm350, %v341, %v472
        %v476 = vsel %vm350, 0, %v474
        %v477 = vmul.f32 %v475, %v475
        %v478 = vmul.f32 %v477, -0.001358992
        %v479 = vadd.f32 %v478, 0.041655596
        %v480 = vmul.f32 %v477, %v479
        %v481 = vadd.f32 %v480, -0.4999988
        %v482 = vmul.f32 %v477, %v481
        %v483 = vadd.f32 1.0, %v482
        %v484 = vmul.f32 %v475, %v475
        %v485 = vmul.f32 %v484, -0.00019511016
        %v486 = vadd.f32 %v485, 0.008332121
        %v487 = vmul.f32 %v484, %v486
        %v488 = vadd.f32 %v487, -0.16666654
        %v489 = vmul.f32 %v484, %v488
        %v490 = vadd.f32 %v489, 1.0
        %v491 = vmul.f32 %v490, %v475
        %vm492 = vweird.f32 %v341
        %v493 = vadd.s32 %v476, 3
        %v494 = vand.u32 %v493, 3
        %vm495 = vcmp.lt.s32.totalorder %v494, 2
        %vm496 = vcmp.eq.s32.totalorder %v494, 0
        %v497 = vxor.u32 %v491, 2147483648
        %v498 = vsel %vm496, %v483, %v497
        %vm499 = vcmp.eq.s32.totalorder %v494, 2
        %v500 = vxor.u32 %v483, 2147483648
        %v501 = vsel %vm499, %v500, %v491
        %v502 = vsel %vm495, %v498, %v501
        %v503 = vsel %vm492, nan, %v502
        %v504 = vand.u32 2147483647, %v342
        %vm505 = vcmp.le.f32.partialorder %v504, 0.7853982
        %vm506 = vcmp.lt.s32.totalorder %v342, 0
        %v507 = vand.u32 %v342, 2139095040
        %v508 = vshrl.u32 %v507, 23
        %v509 = vsub.s32 %v508, 127
        %v510 = vand.u32 2147483647, %v342
        %v511 = vand.u32 %v510, 8388607
        %v512 = vor.u32 %v511, 8388608
        %v513 = vsub.s32 0, %v512
        %v514 = vadd.s32 %v509, 1
        %vm515 = vcmp.gt.s32.totalorder %v514, 0
        %v516 = vsel %vm515, %v514, 0
        %v517 = vshrl.u32 %v516, 5
        %v518 = vand.u32 %v516, 31
        %v519 = vsub.s32 32, %v518
        %v520 = vshrl.u32 683565275, %v519
        %v521 = vshll.u32 683565275, %v518
        %v522 = vshrl.u32 2475754826, %v519
        %v523 = vor.u32 %v521, %v522
        %v524 = vshll.u32 2475754826, %v518
        %v525 = vshrl.u32 2131351028, %v519
        %v526 = vor.u32 %v524, %v525
        %v527 = vshll.u32 2131351028, %v518
        %v528 = vshrl.u32 2102212464, %v519
        %v529 = vor.u32 %v527, %v528
        %v530 = vshll.u32 2102212464, %v518
        %v531 = vshrl.u32 920167782, %v519
        %v532 = vor.u32 %v530, %v531
        %v533 = vshll.u32 920167782, %v518
        %v534 = vshrl.u32 1326507024, %v519
        %v535 = vor.u32 %v533, %v534
        %vm536 = vcmp.lt.s32.totalorder %v517, 1
        %vm537 = vcmp.lt.s32.totalorder %v517, 2
        %vm538 = vcmp.lt.s32.totalorder %v517, 3
        %vm539 = vcmp.lt.s32.totalorder %v517, 4
        %v540 = vsel %vm536, %v520, %v523
        %v541 = vsel %vm539, %v529, 2102212464
        %v542 = vsel %vm538, %v526, %v541
        %v543 = vsel %vm537, %v540, %v542
        %v544 = vsel %vm536, %v523, %v526
        %v545 = vsel %vm539, %v532, 920167782
        %v546 = vsel %vm538, %v529, %v545
        %v547 = vsel %vm537, %v544, %v546
        %v548 = vsel %vm536, %v526, %v529
        %v549 = vsel %vm539, %v535, 1326507024
        %v550 = vsel %vm538, %v532, %v549
        %v551 = vsel %vm537, %v548, %v550
        %v552 = vshll.u32 %v512, 8
        %v553 = vand.u32 %v552, 65535
        %v554 = vshrl.u32 %v552, 16
        %v555 = vand.u32 %v551, 65535
        %v556 = vshrl.u32 %v551, 16
        %v557 = vmul.u32 %v553, %v555
        %v558 = vmul.u32 %v553, %v556
        %v559 = vmul.u32 %v554, %v555
        %v560 = vmul.u32 %v554, %v556
        %v561 = vshll.u32 %v558, 16
        %v562 = vshrl.u32 %v558, 16
        %v563 = vshll.u32 %v559, 16
        %v564 = vshrl.u32 %v559, 16
        %vm565 = vc.u32 %v557, %v561
        %v566 = vsel %vm565, 1, 0
        %v567 = vadd.s32 %v557, %v561
        %v568 = vadd.s32 %v560, %v566
        %vm569 = vc.u32 %v567, %v563
        %v570 = vsel %vm569, 1, 0
        %v571 = vadd.s32 %v567, %v563
        %v572 = vadd.s32 %v568, %v570
        %v573 = vadd.s32 %v572, %v562
        %v574 = vadd.s32 %v573, %v564
        %v575 = vand.u32 %v552, 65535
        %v576 = vshrl.u32 %v552, 16
        %v577 = vand.u32 %v547, 65535
        %v578 = vshrl.u32 %v547, 16
        %v579 = vmul.u32 %v575, %v577
        %v580 = vmul.u32 %v575, %v578
        %v581 = vmul.u32 %v576, %v577
        %v582 = vmul.u32 %v576, %v578
        %v583 = vshll.u32 %v580, 16
        %v584 = vshrl.u32 %v580, 16
        %v585 = vshll.u32 %v581, 16
        %v586 = vshrl.u32 %v581, 16
        %vm587 = vc.u32 %v579, %v583
        %v588 = vsel %vm587, 1, 0
        %v589 = vadd.s32 %v579, %v583
        %v590 = vadd.s32 %v582, %v588
        %vm591 = vc.u32 %v589, %v585
        %v592 = vsel %vm591, 1, 0
        %v593 = vadd.s32 %v589, %v585
        %v594 = vadd.s32 %v590, %v592
        %v595 = vadd.s32 %v594, %v584
        %v596 = vadd.s32 %v595, %v586
        %v597 = vmul.u32 %v552, %v543
        %v598 = vadd.s32 %v574, %v593
        %vm599 = vc.u32 %v574, %v593
        %v600 = vadd.s32 %v596, 1
        %v601 = vsel %vm599, %v600, %v596
        %v602 = vadd.s32 %v597, %v601
        %v603 = vadd.s32 %v602, 536870912
        %v604 = vshrl.u32 %v603, 30
        %v605 = vshll.u32 %v604, 30
        %v606 = vsub.s32 %v602, %v605
        %vm607 = vcmp.lt.s32.totalorder %v606, 0
        %v608 = vsub.s32 0, %v606
        %v609 = vsel %vm607, %v608, %v606
        %v610 = vclz %v609
        %v611 = vsub.s32 %v610, 2
        %vm612 = vcmp.gt.s32.totalorder 0, %v611
        %v613 = vsel %vm612, 0, %v611
        %v614 = vsub.s32 32, %v613
        %v615 = vshll.u32 %v606, %v613
        %v616 = vshrl.u32 %v598, %v614
        %v617 = vor.u32 %v615, %v616
        %v618 = vsub.s32 4294967266, %v613
        %v619 = vadd.s32 %v618, 127
        %v620 = vshll.u32 %v619, 23
        %v621 = vor.u32 4788187, %v620
        %v622 = vand.u32 2147483647, %v621
        %v624 = vcvt.s32.f32 %v617
        %v625 = vmul.f32 %v624, %v622
        %v626 = vxor.u32 %v625, 2147483648
        %v627 = vsel %vm506, %v626, %v625
        %v628 = vsub.s32 4, %v604
        %v629 = vsel %vm506, %v628, %v604
        %v630 = vsel %vm505, %v342, %v627
        %v631 = vsel %vm505, 0, %v629
        %v632 = vmul.f32 %v630, %v630
        %v633 = vmul.f32 %v632, -0.001358992
        %v634 = vadd.f32 %v633, 0.041655596
        %v635 = vmul.f32 %v632, %v634
        %v636 = vadd.f32 %v635, -0.4999988
        %v637 = vmul.f32 %v632, %v636
        %v638 = vadd.f32 1.0, %v637
        %v639 = vmul.f32 %v630, %v630
        %v640 = vmul.f32 %v639, -0.00019511016
        %v641 = vadd.f32 %v640, 0.008332121
        %v642 = vmul.f32 %v639, %v641
        %v643 = vadd.f32 %v642, -0.16666654
        %v644 = vmul.f32 %v639, %v643
        %v645 = vadd.f32 %v644, 1.0
        %v646 = vmul.f32 %v645, %v630
        %vm647 = vweird.f32 %v342
        %v648 = vadd.s32 %v631, 3
        %v649 = vand.u32 %v648, 3
        %vm650 = vcmp.lt.s32.totalorder %v649, 2
        %vm651 = vcmp.eq.s32.totalorder %v649, 0
        %v652 = vxor.u32 %v646, 2147483648
        %v653 = vsel %vm651, %v638, %v652
        %vm654 = vcmp.eq.s32.totalorder %v649, 2
        %v655 = vxor.u32 %v638, 2147483648
        %v656 = vsel %vm654, %v655, %v646
        %v657 = vsel %vm650, %v653, %v656
        %v658 = vsel %vm647, nan, %v657
        %v659 = vand.u32 2147483647, %v343
        %vm660 = vcmp.le.f32.partialorder %v659, 0.7853982
        %vm661 = vcmp.lt.s32.totalorder %v343, 0
        %v662 = vand.u32 %v343, 2139095040
        %v663 = vshrl.u32 %v662, 23
        %v664 = vsub.s32 %v663, 127
        %v665 = vand.u32 2147483647, %v343
        %v666 = vand.u32 %v665, 8388607
        %v667 = vor.u32 %v666, 8388608
        %v668 = vsub.s32 0, %v667
        %v669 = vadd.s32 %v664, 1
        %vm670 = vcmp.gt.s32.totalorder %v669, 0
        %v671 = vsel %vm670, %v669, 0
        %v672 = vshrl.u32 %v671, 5
        %v673 = vand.u32 %v671, 31
        %v674 = vsub.s32 32, %v673
        %v675 = vshrl.u32 683565275, %v674
        %v676 = vshll.u32 683565275, %v673
        %v677 = vshrl.u32 2475754826, %v674
        %v678 = vor.u32 %v676, %v677
        %v679 = vshll.u32 2475754826, %v673
        %v680 = vshrl.u32 2131351028, %v674
        %v681 = vor.u32 %v679, %v680
        %v682 = vshll.u32 2131351028, %v673
        %v683 = vshrl.u32 2102212464, %v674
        %v684 = vor.u32 %v682, %v683
        %v685 = vshll.u32 2102212464, %v673
        %v686 = vshrl.u32 920167782, %v674
        %v687 = vor.u32 %v685, %v686
        %v688 = vshll.u32 920167782, %v673
        %v689 = vshrl.u32 1326507024, %v674
        %v690 = vor.u32 %v688, %v689
        %vm691 = vcmp.lt.s32.totalorder %v672, 1
        %vm692 = vcmp.lt.s32.totalorder %v672, 2
        %vm693 = vcmp.lt.s32.totalorder %v672, 3
        %vm694 = vcmp.lt.s32.totalorder %v672, 4
        %v695 = vsel %vm691, %v675, %v678
        %v696 = vsel %vm694, %v684, 2102212464
        %v697 = vsel %vm693, %v681, %v696
        %v698 = vsel %vm692, %v695, %v697
        %v699 = vsel %vm691, %v678, %v681
        %v700 = vsel %vm694, %v687, 920167782
        %v701 = vsel %vm693, %v684, %v700
        %v702 = vsel %vm692, %v699, %v701
        %v703 = vsel %vm691, %v681, %v684
        %v704 = vsel %vm694, %v690, 1326507024
        %v705 = vsel %vm693, %v687, %v704
        %v706 = vsel %vm692, %v703, %v705
        %v707 = vshll.u32 %v667, 8
        %v708 = vand.u32 %v707, 65535
        %v709 = vshrl.u32 %v707, 16
        %v710 = vand.u32 %v706, 65535
        %v711 = vshrl.u32 %v706, 16
        %v712 = vmul.u32 %v708, %v710
        %v713 = vmul.u32 %v708, %v711
        %v714 = vmul.u32 %v709, %v710
        %v715 = vmul.u32 %v709, %v711
        %v716 = vshll.u32 %v713, 16
        %v717 = vshrl.u32 %v713, 16
        %v718 = vshll.u32 %v714, 16
        %v719 = vshrl.u32 %v714, 16
        %vm720 = vc.u32 %v712, %v716
        %v721 = vsel %vm720, 1, 0
        %v722 = vadd.s32 %v712, %v716
        %v723 = vadd.s32 %v715, %v721
        %vm724 = vc.u32 %v722, %v718
        %v725 = vsel %vm724, 1, 0
        %v726 = vadd.s32 %v722, %v718
        %v727 = vadd.s32 %v723, %v725
        %v728 = vadd.s32 %v727, %v717
        %v729 = vadd.s32 %v728, %v719
        %v730 = vand.u32 %v707, 65535
        %v731 = vshrl.u32 %v707, 16
        %v732 = vand.u32 %v702, 65535
        %v733 = vshrl.u32 %v702, 16
        %v734 = vmul.u32 %v730, %v732
        %v735 = vmul.u32 %v730, %v733
        %v736 = vmul.u32 %v731, %v732
        %v737 = vmul.u32 %v731, %v733
        %v738 = vshll.u32 %v735, 16
        %v739 = vshrl.u32 %v735, 16
        %v740 = vshll.u32 %v736, 16
        %v741 = vshrl.u32 %v736, 16
        %vm742 = vc.u32 %v734, %v738
        %v743 = vsel %vm742, 1, 0
        %v744 = vadd.s32 %v734, %v738
        %v745 = vadd.s32 %v737, %v743
        %vm746 = vc.u32 %v744, %v740
        %v747 = vsel %vm746, 1, 0
        %v748 = vadd.s32 %v744, %v740
        %v749 = vadd.s32 %v745, %v747
        %v750 = vadd.s32 %v749, %v739
        %v751 = vadd.s32 %v750, %v741
        %v752 = vmul.u32 %v707, %v698
        %v753 = vadd.s32 %v729, %v748
        %vm754 = vc.u32 %v729, %v748
        %v755 = vadd.s32 %v751, 1
        %v756 = vsel %vm754, %v755, %v751
        %v757 = vadd.s32 %v752, %v756
        %v758 = vadd.s32 %v757, 536870912
        %v759 = vshrl.u32 %v758, 30
        %v760 = vshll.u32 %v759, 30
        %v761 = vsub.s32 %v757, %v760
        %vm762 = vcmp.lt.s32.totalorder %v761, 0
        %v763 = vsub.s32 0, %v761
        %v764 = vsel %vm762, %v763, %v761
        %v765 = vclz %v764
        %v766 = vsub.s32 %v765, 2
        %vm767 = vcmp.gt.s32.totalorder 0, %v766
        %v768 = vsel %vm767, 0, %v766
        %v769 = vsub.s32 32, %v768
        %v770 = vshll.u32 %v761, %v768
        %v771 = vshrl.u32 %v753, %v769
        %v772 = vor.u32 %v770, %v771
        %v773 = vsub.s32 4294967266, %v768
        %v774 = vadd.s32 %v773, 127
        %v775 = vshll.u32 %v774, 23
        %v776 = vor.u32 4788187, %v775
        %v777 = vand.u32 2147483647, %v776
        %v779 = vcvt.s32.f32 %v772
        %v780 = vmul.f32 %v779, %v777
        %v781 = vxor.u32 %v780, 2147483648
        %v782 = vsel %vm661, %v781, %v780
        %v783 = vsub.s32 4, %v759
        %v784 = vsel %vm661, %v783, %v759
        %v785 = vsel %vm660, %v343, %v782
        %v786 = vsel %vm660, 0, %v784
        %v787 = vmul.f32 %v785, %v785
        %v788 = vmul.f32 %v787, -0.001358992
        %v789 = vadd.f32 %v788, 0.041655596
        %v790 = vmul.f32 %v787, %v789
        %v791 = vadd.f32 %v790, -0.4999988
        %v792 = vmul.f32 %v787, %v791
        %v793 = vadd.f32 1.0, %v792
        %v794 = vmul.f32 %v785, %v785
        %v795 = vmul.f32 %v794, -0.00019511016
        %v796 = vadd.f32 %v795, 0.008332121
        %v797 = vmul.f32 %v794, %v796
        %v798 = vadd.f32 %v797, -0.16666654
        %v799 = vmul.f32 %v794, %v798
        %v800 = vadd.f32 %v799, 1.0
        %v801 = vmul.f32 %v800, %v785
        %vm802 = vweird.f32 %v343
        %v803 = vadd.s32 %v786, 3
        %v804 = vand.u32 %v803, 3
        %vm805 = vcmp.lt.s32.totalorder %v804, 2
        %vm806 = vcmp.eq.s32.totalorder %v804, 0
        %v807 = vxor.u32 %v801, 2147483648
        %v808 = vsel %vm806, %v793, %v807
        %vm809 = vcmp.eq.s32.totalorder %v804, 2
        %v810 = vxor.u32 %v793, 2147483648
        %v811 = vsel %vm809, %v810, %v801
        %v812 = vsel %vm805, %v808, %v811
        %v813 = vsel %vm802, nan, %v812
        %v814 = vand.u32 2147483647, %v344
        %vm815 = vcmp.le.f32.partialorder %v814, 0.7853982
        %vm816 = vcmp.lt.s32.totalorder %v344, 0
        %v817 = vand.u32 %v344, 2139095040
        %v818 = vshrl.u32 %v817, 23
        %v819 = vsub.s32 %v818, 127
        %v820 = vand.u32 2147483647, %v344
        %v821 = vand.u32 %v820, 8388607
        %v822 = vor.u32 %v821, 8388608
        %v823 = vsub.s32 0, %v822
        %v824 = vadd.s32 %v819, 1
        %vm825 = vcmp.gt.s32.totalorder %v824, 0
        %v826 = vsel %vm825, %v824, 0
        %v827 = vshrl.u32 %v826, 5
        %v828 = vand.u32 %v826, 31
        %v829 = vsub.s32 32, %v828
        %v830 = vshrl.u32 683565275, %v829
        %v831 = vshll.u32 683565275, %v828
        %v832 = vshrl.u32 2475754826, %v829
        %v833 = vor.u32 %v831, %v832
        %v834 = vshll.u32 2475754826, %v828
        %v835 = vshrl.u32 2131351028, %v829
        %v836 = vor.u32 %v834, %v835
        %v837 = vshll.u32 2131351028, %v828
        %v838 = vshrl.u32 2102212464, %v829
        %v839 = vor.u32 %v837, %v838
        %v840 = vshll.u32 2102212464, %v828
        %v841 = vshrl.u32 920167782, %v829
        %v842 = vor.u32 %v840, %v841
        %v843 = vshll.u32 920167782, %v828
        %v844 = vshrl.u32 1326507024, %v829
        %v845 = vor.u32 %v843, %v844
        %vm846 = vcmp.lt.s32.totalorder %v827, 1
        %vm847 = vcmp.lt.s32.totalorder %v827, 2
        %vm848 = vcmp.lt.s32.totalorder %v827, 3
        %vm849 = vcmp.lt.s32.totalorder %v827, 4
        %v850 = vsel %vm846, %v830, %v833
        %v851 = vsel %vm849, %v839, 2102212464
        %v852 = vsel %vm848, %v836, %v851
        %v853 = vsel %vm847, %v850, %v852
        %v854 = vsel %vm846, %v833, %v836
        %v855 = vsel %vm849, %v842, 920167782
        %v856 = vsel %vm848, %v839, %v855
        %v857 = vsel %vm847, %v854, %v856
        %v858 = vsel %vm846, %v836, %v839
        %v859 = vsel %vm849, %v845, 1326507024
        %v860 = vsel %vm848, %v842, %v859
        %v861 = vsel %vm847, %v858, %v860
        %v862 = vshll.u32 %v822, 8
        %v863 = vand.u32 %v862, 65535
        %v864 = vshrl.u32 %v862, 16
        %v865 = vand.u32 %v861, 65535
        %v866 = vshrl.u32 %v861, 16
        %v867 = vmul.u32 %v863, %v865
        %v868 = vmul.u32 %v863, %v866
        %v869 = vmul.u32 %v864, %v865
        %v870 = vmul.u32 %v864, %v866
        %v871 = vshll.u32 %v868, 16
        %v872 = vshrl.u32 %v868, 16
        %v873 = vshll.u32 %v869, 16
        %v874 = vshrl.u32 %v869, 16
        %vm875 = vc.u32 %v867, %v871
        %v876 = vsel %vm875, 1, 0
        %v877 = vadd.s32 %v867, %v871
        %v878 = vadd.s32 %v870, %v876
        %vm879 = vc.u32 %v877, %v873
        %v880 = vsel %vm879, 1, 0
        %v881 = vadd.s32 %v877, %v873
        %v882 = vadd.s32 %v878, %v880
        %v883 = vadd.s32 %v882, %v872
        %v884 = vadd.s32 %v883, %v874
        %v885 = vand.u32 %v862, 65535
        %v886 = vshrl.u32 %v862, 16
        %v887 = vand.u32 %v857, 65535
        %v888 = vshrl.u32 %v857, 16
        %v889 = vmul.u32 %v885, %v887
        %v890 = vmul.u32 %v885, %v888
        %v891 = vmul.u32 %v886, %v887
        %v892 = vmul.u32 %v886, %v888
        %v893 = vshll.u32 %v890, 16
        %v894 = vshrl.u32 %v890, 16
        %v895 = vshll.u32 %v891, 16
        %v896 = vshrl.u32 %v891, 16
        %vm897 = vc.u32 %v889, %v893
        %v898 = vsel %vm897, 1, 0
        %v899 = vadd.s32 %v889, %v893
        %v900 = vadd.s32 %v892, %v898
        %vm901 = vc.u32 %v899, %v895
        %v902 = vsel %vm901, 1, 0
        %v903 = vadd.s32 %v899, %v895
        %v904 = vadd.s32 %v900, %v902
        %v905 = vadd.s32 %v904, %v894
        %v906 = vadd.s32 %v905, %v896
        %v907 = vmul.u32 %v862, %v853
        %v908 = vadd.s32 %v884, %v903
        %vm909 = vc.u32 %v884, %v903
        %v910 = vadd.s32 %v906, 1
        %v911 = vsel %vm909, %v910, %v906
        %v912 = vadd.s32 %v907, %v911
        %v913 = vadd.s32 %v912, 536870912
        %v914 = vshrl.u32 %v913, 30
        %v915 = vshll.u32 %v914, 30
        %v916 = vsub.s32 %v912, %v915
        %vm917 = vcmp.lt.s32.totalorder %v916, 0
        %v918 = vsub.s32 0, %v916
        %v919 = vsel %vm917, %v918, %v916
        %v920 = vclz %v919
        %v921 = vsub.s32 %v920, 2
        %vm922 = vcmp.gt.s32.totalorder 0, %v921
        %v923 = vsel %vm922, 0, %v921
        %v924 = vsub.s32 32, %v923
        %v925 = vshll.u32 %v916, %v923
        %v926 = vshrl.u32 %v908, %v924
        %v927 = vor.u32 %v925, %v926
        %v928 = vsub.s32 4294967266, %v923
        %v929 = vadd.s32 %v928, 127
        %v930 = vshll.u32 %v929, 23
        %v931 = vor.u32 4788187, %v930
        %v932 = vand.u32 2147483647, %v931
        %v934 = vcvt.s32.f32 %v927
        %v935 = vmul.f32 %v934, %v932
        %v936 = vxor.u32 %v935, 2147483648
        %v937 = vsel %vm816, %v936, %v935
        %v938 = vsub.s32 4, %v914
        %v939 = vsel %vm816, %v938, %v914
        %v940 = vsel %vm815, %v344, %v937
        %v941 = vsel %vm815, 0, %v939
        %v942 = vmul.f32 %v940, %v940
        %v943 = vmul.f32 %v942, -0.001358992
        %v944 = vadd.f32 %v943, 0.041655596
        %v945 = vmul.f32 %v942, %v944
        %v946 = vadd.f32 %v945, -0.4999988
        %v947 = vmul.f32 %v942, %v946
        %v948 = vadd.f32 1.0, %v947
        %v949 = vmul.f32 %v940, %v940
        %v950 = vmul.f32 %v949, -0.00019511016
        %v951 = vadd.f32 %v950, 0.008332121
        %v952 = vmul.f32 %v949, %v951
        %v953 = vadd.f32 %v952, -0.16666654
        %v954 = vmul.f32 %v949, %v953
        %v955 = vadd.f32 %v954, 1.0
        %v956 = vmul.f32 %v955, %v940
        %vm957 = vweird.f32 %v344
        %v958 = vadd.s32 %v941, 3
        %v959 = vand.u32 %v958, 3
        %vm960 = vcmp.lt.s32.totalorder %v959, 2
        %vm961 = vcmp.eq.s32.totalorder %v959, 0
        %v962 = vxor.u32 %v956, 2147483648
        %v963 = vsel %vm961, %v948, %v962
        %vm964 = vcmp.eq.s32.totalorder %v959, 2
        %v965 = vxor.u32 %v948, 2147483648
        %v966 = vsel %vm964, %v965, %v956
        %v967 = vsel %vm960, %v963, %v966
        %v968 = vsel %vm957, nan, %v967
        %v969 = vand.u32 2147483647, %v345
        %vm970 = vcmp.le.f32.partialorder %v969, 0.7853982
        %vm971 = vcmp.lt.s32.totalorder %v345, 0
        %v972 = vand.u32 %v345, 2139095040
        %v973 = vshrl.u32 %v972, 23
        %v974 = vsub.s32 %v973, 127
        %v975 = vand.u32 2147483647, %v345
        %v976 = vand.u32 %v975, 8388607
        %v977 = vor.u32 %v976, 8388608
        %v978 = vsub.s32 0, %v977
        %v979 = vadd.s32 %v974, 1
        %vm980 = vcmp.gt.s32.totalorder %v979, 0
        %v981 = vsel %vm980, %v979, 0
        %v982 = vshrl.u32 %v981, 5
        %v983 = vand.u32 %v981, 31
        %v984 = vsub.s32 32, %v983
        %v985 = vshrl.u32 683565275, %v984
        %v986 = vshll.u32 683565275, %v983
        %v987 = vshrl.u32 2475754826, %v984
        %v988 = vor.u32 %v986, %v987
        %v989 = vshll.u32 2475754826, %v983
        %v990 = vshrl.u32 2131351028, %v984
        %v991 = vor.u32 %v989, %v990
        %v992 = vshll.u32 2131351028, %v983
        %v993 = vshrl.u32 2102212464, %v984
        %v994 = vor.u32 %v992, %v993
        %v995 = vshll.u32 2102212464, %v983
        %v996 = vshrl.u32 920167782, %v984
        %v997 = vor.u32 %v995, %v996
        %v998 = vshll.u32 920167782, %v983
        %v999 = vshrl.u32 1326507024, %v984
        %v1000 = vor.u32 %v998, %v999
        %vm1001 = vcmp.lt.s32.totalorder %v982, 1
        %vm1002 = vcmp.lt.s32.totalorder %v982, 2
        %vm1003 = vcmp.lt.s32.totalorder %v982, 3
        %vm1004 = vcmp.lt.s32.totalorder %v982, 4
        %v1005 = vsel %vm1001, %v985, %v988
        %v1006 = vsel %vm1004, %v994, 2102212464
        %v1007 = vsel %vm1003, %v991, %v1006
        %v1008 = vsel %vm1002, %v1005, %v1007
        %v1009 = vsel %vm1001, %v988, %v991
        %v1010 = vsel %vm1004, %v997, 920167782
        %v1011 = vsel %vm1003, %v994, %v1010
        %v1012 = vsel %vm1002, %v1009, %v1011
        %v1013 = vsel %vm1001, %v991, %v994
        %v1014 = vsel %vm1004, %v1000, 1326507024
        %v1015 = vsel %vm1003, %v997, %v1014
        %v1016 = vsel %vm1002, %v1013, %v1015
        %v1017 = vshll.u32 %v977, 8
        %v1018 = vand.u32 %v1017, 65535
        %v1019 = vshrl.u32 %v1017, 16
        %v1020 = vand.u32 %v1016, 65535
        %v1021 = vshrl.u32 %v1016, 16
        %v1022 = vmul.u32 %v1018, %v1020
        %v1023 = vmul.u32 %v1018, %v1021
        %v1024 = vmul.u32 %v1019, %v1020
        %v1025 = vmul.u32 %v1019, %v1021
        %v1026 = vshll.u32 %v1023, 16
        %v1027 = vshrl.u32 %v1023, 16
        %v1028 = vshll.u32 %v1024, 16
        %v1029 = vshrl.u32 %v1024, 16
        %vm1030 = vc.u32 %v1022, %v1026
        %v1031 = vsel %vm1030, 1, 0
        %v1032 = vadd.s32 %v1022, %v1026
        %v1033 = vadd.s32 %v1025, %v1031
        %vm1034 = vc.u32 %v1032, %v1028
        %v1035 = vsel %vm1034, 1, 0
        %v1036 = vadd.s32 %v1032, %v1028
        %v1037 = vadd.s32 %v1033, %v1035
        %v1038 = vadd.s32 %v1037, %v1027
        %v1039 = vadd.s32 %v1038, %v1029
        %v1040 = vand.u32 %v1017, 65535
        %v1041 = vshrl.u32 %v1017, 16
        %v1042 = vand.u32 %v1012, 65535
        %v1043 = vshrl.u32 %v1012, 16
        %v1044 = vmul.u32 %v1040, %v1042
        %v1045 = vmul.u32 %v1040, %v1043
        %v1046 = vmul.u32 %v1041, %v1042
        %v1047 = vmul.u32 %v1041, %v1043
        %v1048 = vshll.u32 %v1045, 16
        %v1049 = vshrl.u32 %v1045, 16
        %v1050 = vshll.u32 %v1046, 16
        %v1051 = vshrl.u32 %v1046, 16
        %vm1052 = vc.u32 %v1044, %v1048
        %v1053 = vsel %vm1052, 1, 0
        %v1054 = vadd.s32 %v1044, %v1048
        %v1055 = vadd.s32 %v1047, %v1053
        %vm1056 = vc.u32 %v1054, %v1050
        %v1057 = vsel %vm1056, 1, 0
        %v1058 = vadd.s32 %v1054, %v1050
        %v1059 = vadd.s32 %v1055, %v1057
        %v1060 = vadd.s32 %v1059, %v1049
        %v1061 = vadd.s32 %v1060, %v1051
        %v1062 = vmul.u32 %v1017, %v1008
        %v1063 = vadd.s32 %v1039, %v1058
        %vm1064 = vc.u32 %v1039, %v1058
        %v1065 = vadd.s32 %v1061, 1
        %v1066 = vsel %vm1064, %v1065, %v1061
        %v1067 = vadd.s32 %v1062, %v1066
        %v1068 = vadd.s32 %v1067, 536870912
        %v1069 = vshrl.u32 %v1068, 30
        %v1070 = vshll.u32 %v1069, 30
        %v1071 = vsub.s32 %v1067, %v1070
        %vm1072 = vcmp.lt.s32.totalorder %v1071, 0
        %v1073 = vsub.s32 0, %v1071
        %v1074 = vsel %vm1072, %v1073, %v1071
        %v1075 = vclz %v1074
        %v1076 = vsub.s32 %v1075, 2
        %vm1077 = vcmp.gt.s32.totalorder 0, %v1076
        %v1078 = vsel %vm1077, 0, %v1076
        %v1079 = vsub.s32 32, %v1078
        %v1080 = vshll.u32 %v1071, %v1078
        %v1081 = vshrl.u32 %v1063, %v1079
        %v1082 = vor.u32 %v1080, %v1081
        %v1083 = vsub.s32 4294967266, %v1078
        %v1084 = vadd.s32 %v1083, 127
        %v1085 = vshll.u32 %v1084, 23
        %v1086 = vor.u32 4788187, %v1085
        %v1087 = vand.u32 2147483647, %v1086
        %v1089 = vcvt.s32.f32 %v1082
        %v1090 = vmul.f32 %v1089, %v1087
        %v1091 = vxor.u32 %v1090, 2147483648
        %v1092 = vsel %vm971, %v1091, %v1090
        %v1093 = vsub.s32 4, %v1069
        %v1094 = vsel %vm971, %v1093, %v1069
        %v1095 = vsel %vm970, %v345, %v1092
        %v1096 = vsel %vm970, 0, %v1094
        %v1097 = vmul.f32 %v1095, %v1095
        %v1098 = vmul.f32 %v1097, -0.001358992
        %v1099 = vadd.f32 %v1098, 0.041655596
        %v1100 = vmul.f32 %v1097, %v1099
        %v1101 = vadd.f32 %v1100, -0.4999988
        %v1102 = vmul.f32 %v1097, %v1101
        %v1103 = vadd.f32 1.0, %v1102
        %v1104 = vmul.f32 %v1095, %v1095
        %v1105 = vmul.f32 %v1104, -0.00019511016
        %v1106 = vadd.f32 %v1105, 0.008332121
        %v1107 = vmul.f32 %v1104, %v1106
        %v1108 = vadd.f32 %v1107, -0.16666654
        %v1109 = vmul.f32 %v1104, %v1108
        %v1110 = vadd.f32 %v1109, 1.0
        %v1111 = vmul.f32 %v1110, %v1095
        %vm1112 = vweird.f32 %v345
        %v1113 = vadd.s32 %v1096, 3
        %v1114 = vand.u32 %v1113, 3
        %vm1115 = vcmp.lt.s32.totalorder %v1114, 2
        %vm1116 = vcmp.eq.s32.totalorder %v1114, 0
        %v1117 = vxor.u32 %v1111, 2147483648
        %v1118 = vsel %vm1116, %v1103, %v1117
        %vm1119 = vcmp.eq.s32.totalorder %v1114, 2
        %v1120 = vxor.u32 %v1103, 2147483648
        %v1121 = vsel %vm1119, %v1120, %v1111
        %v1122 = vsel %vm1115, %v1118, %v1121
        %v1123 = vsel %vm1112, nan, %v1122
        %v1124 = vand.u32 2147483647, %v346
        %vm1125 = vcmp.le.f32.partialorder %v1124, 0.7853982
        %vm1126 = vcmp.lt.s32.totalorder %v346, 0
        %v1127 = vand.u32 %v346, 2139095040
        %v1128 = vshrl.u32 %v1127, 23
        %v1129 = vsub.s32 %v1128, 127
        %v1130 = vand.u32 2147483647, %v346
        %v1131 = vand.u32 %v1130, 8388607
        %v1132 = vor.u32 %v1131, 8388608
        %v1133 = vsub.s32 0, %v1132
        %v1134 = vadd.s32 %v1129, 1
        %vm1135 = vcmp.gt.s32.totalorder %v1134, 0
        %v1136 = vsel %vm1135, %v1134, 0
        %v1137 = vshrl.u32 %v1136, 5
        %v1138 = vand.u32 %v1136, 31
        %v1139 = vsub.s32 32, %v1138
        %v1140 = vshrl.u32 683565275, %v1139
        %v1141 = vshll.u32 683565275, %v1138
        %v1142 = vshrl.u32 2475754826, %v1139
        %v1143 = vor.u32 %v1141, %v1142
        %v1144 = vshll.u32 2475754826, %v1138
        %v1145 = vshrl.u32 2131351028, %v1139
        %v1146 = vor.u32 %v1144, %v1145
        %v1147 = vshll.u32 2131351028, %v1138
        %v1148 = vshrl.u32 2102212464, %v1139
        %v1149 = vor.u32 %v1147, %v1148
        %v1150 = vshll.u32 2102212464, %v1138
        %v1151 = vshrl.u32 920167782, %v1139
        %v1152 = vor.u32 %v1150, %v1151
        %v1153 = vshll.u32 920167782, %v1138
        %v1154 = vshrl.u32 1326507024, %v1139
        %v1155 = vor.u32 %v1153, %v1154
        %vm1156 = vcmp.lt.s32.totalorder %v1137, 1
        %vm1157 = vcmp.lt.s32.totalorder %v1137, 2
        %vm1158 = vcmp.lt.s32.totalorder %v1137, 3
        %vm1159 = vcmp.lt.s32.totalorder %v1137, 4
        %v1160 = vsel %vm1156, %v1140, %v1143
        %v1161 = vsel %vm1159, %v1149, 2102212464
        %v1162 = vsel %vm1158, %v1146, %v1161
        %v1163 = vsel %vm1157, %v1160, %v1162
        %v1164 = vsel %vm1156, %v1143, %v1146
        %v1165 = vsel %vm1159, %v1152, 920167782
        %v1166 = vsel %vm1158, %v1149, %v1165
        %v1167 = vsel %vm1157, %v1164, %v1166
        %v1168 = vsel %vm1156, %v1146, %v1149
        %v1169 = vsel %vm1159, %v1155, 1326507024
        %v1170 = vsel %vm1158, %v1152, %v1169
        %v1171 = vsel %vm1157, %v1168, %v1170
        %v1172 = vshll.u32 %v1132, 8
        %v1173 = vand.u32 %v1172, 65535
        %v1174 = vshrl.u32 %v1172, 16
        %v1175 = vand.u32 %v1171, 65535
        %v1176 = vshrl.u32 %v1171, 16
        %v1177 = vmul.u32 %v1173, %v1175
        %v1178 = vmul.u32 %v1173, %v1176
        %v1179 = vmul.u32 %v1174, %v1175
        %v1180 = vmul.u32 %v1174, %v1176
        %v1181 = vshll.u32 %v1178, 16
        %v1182 = vshrl.u32 %v1178, 16
        %v1183 = vshll.u32 %v1179, 16
        %v1184 = vshrl.u32 %v1179, 16
        %vm1185 = vc.u32 %v1177, %v1181
        %v1186 = vsel %vm1185, 1, 0
        %v1187 = vadd.s32 %v1177, %v1181
        %v1188 = vadd.s32 %v1180, %v1186
        %vm1189 = vc.u32 %v1187, %v1183
        %v1190 = vsel %vm1189, 1, 0
        %v1191 = vadd.s32 %v1187, %v1183
        %v1192 = vadd.s32 %v1188, %v1190
        %v1193 = vadd.s32 %v1192, %v1182
        %v1194 = vadd.s32 %v1193, %v1184
        %v1195 = vand.u32 %v1172, 65535
        %v1196 = vshrl.u32 %v1172, 16
        %v1197 = vand.u32 %v1167, 65535
        %v1198 = vshrl.u32 %v1167, 16
        %v1199 = vmul.u32 %v1195, %v1197
        %v1200 = vmul.u32 %v1195, %v1198
        %v1201 = vmul.u32 %v1196, %v1197
        %v1202 = vmul.u32 %v1196, %v1198
        %v1203 = vshll.u32 %v1200, 16
        %v1204 = vshrl.u32 %v1200, 16
        %v1205 = vshll.u32 %v1201, 16
        %v1206 = vshrl.u32 %v1201, 16
        %vm1207 = vc.u32 %v1199, %v1203
        %v1208 = vsel %vm1207, 1, 0
        %v1209 = vadd.s32 %v1199, %v1203
        %v1210 = vadd.s32 %v1202, %v1208
        %vm1211 = vc.u32 %v1209, %v1205
        %v1212 = vsel %vm1211, 1, 0
        %v1213 = vadd.s32 %v1209, %v1205
        %v1214 = vadd.s32 %v1210, %v1212
        %v1215 = vadd.s32 %v1214, %v1204
        %v1216 = vadd.s32 %v1215, %v1206
        %v1217 = vmul.u32 %v1172, %v1163
        %v1218 = vadd.s32 %v1194, %v1213
        %vm1219 = vc.u32 %v1194, %v1213
        %v1220 = vadd.s32 %v1216, 1
        %v1221 = vsel %vm1219, %v1220, %v1216
        %v1222 = vadd.s32 %v1217, %v1221
        %v1223 = vadd.s32 %v1222, 536870912
        %v1224 = vshrl.u32 %v1223, 30
        %v1225 = vshll.u32 %v1224, 30
        %v1226 = vsub.s32 %v1222, %v1225
        %vm1227 = vcmp.lt.s32.totalorder %v1226, 0
        %v1228 = vsub.s32 0, %v1226
        %v1229 = vsel %vm1227, %v1228, %v1226
        %v1230 = vclz %v1229
        %v1231 = vsub.s32 %v1230, 2
        %vm1232 = vcmp.gt.s32.totalorder 0, %v1231
        %v1233 = vsel %vm1232, 0, %v1231
        %v1234 = vsub.s32 32, %v1233
        %v1235 = vshll.u32 %v1226, %v1233
        %v1236 = vshrl.u32 %v1218, %v1234
        %v1237 = vor.u32 %v1235, %v1236
        %v1238 = vsub.s32 4294967266, %v1233
        %v1239 = vadd.s32 %v1238, 127
        %v1240 = vshll.u32 %v1239, 23
        %v1241 = vor.u32 4788187, %v1240
        %v1242 = vand.u32 2147483647, %v1241
        %v1244 = vcvt.s32.f32 %v1237
        %v1245 = vmul.f32 %v1244, %v1242
        %v1246 = vxor.u32 %v1245, 2147483648
        %v1247 = vsel %vm1126, %v1246, %v1245
        %v1248 = vsub.s32 4, %v1224
        %v1249 = vsel %vm1126, %v1248, %v1224
        %v1250 = vsel %vm1125, %v346, %v1247
        %v1251 = vsel %vm1125, 0, %v1249
        %v1252 = vmul.f32 %v1250, %v1250
        %v1253 = vmul.f32 %v1252, -0.001358992
        %v1254 = vadd.f32 %v1253, 0.041655596
        %v1255 = vmul.f32 %v1252, %v1254
        %v1256 = vadd.f32 %v1255, -0.4999988
        %v1257 = vmul.f32 %v1252, %v1256
        %v1258 = vadd.f32 1.0, %v1257
        %v1259 = vmul.f32 %v1250, %v1250
        %v1260 = vmul.f32 %v1259, -0.00019511016
        %v1261 = vadd.f32 %v1260, 0.008332121
        %v1262 = vmul.f32 %v1259, %v1261
        %v1263 = vadd.f32 %v1262, -0.16666654
        %v1264 = vmul.f32 %v1259, %v1263
        %v1265 = vadd.f32 %v1264, 1.0
        %v1266 = vmul.f32 %v1265, %v1250
        %vm1267 = vweird.f32 %v346
        %v1268 = vadd.s32 %v1251, 3
        %v1269 = vand.u32 %v1268, 3
        %vm1270 = vcmp.lt.s32.totalorder %v1269, 2
        %vm1271 = vcmp.eq.s32.totalorder %v1269, 0
        %v1272 = vxor.u32 %v1266, 2147483648
        %v1273 = vsel %vm1271, %v1258, %v1272
        %vm1274 = vcmp.eq.s32.totalorder %v1269, 2
        %v1275 = vxor.u32 %v1258, 2147483648
        %v1276 = vsel %vm1274, %v1275, %v1266
        %v1277 = vsel %vm1270, %v1273, %v1276
        %v1278 = vsel %vm1267, nan, %v1277
        %v1279 = vand.u32 2147483647, %v347
        %vm1280 = vcmp.le.f32.partialorder %v1279, 0.7853982
        %vm1281 = vcmp.lt.s32.totalorder %v347, 0
        %v1282 = vand.u32 %v347, 2139095040
        %v1283 = vshrl.u32 %v1282, 23
        %v1284 = vsub.s32 %v1283, 127
        %v1285 = vand.u32 2147483647, %v347
        %v1286 = vand.u32 %v1285, 8388607
        %v1287 = vor.u32 %v1286, 8388608
        %v1288 = vsub.s32 0, %v1287
        %v1289 = vadd.s32 %v1284, 1
        %vm1290 = vcmp.gt.s32.totalorder %v1289, 0
        %v1291 = vsel %vm1290, %v1289, 0
        %v1292 = vshrl.u32 %v1291, 5
        %v1293 = vand.u32 %v1291, 31
        %v1294 = vsub.s32 32, %v1293
        %v1295 = vshrl.u32 683565275, %v1294
        %v1296 = vshll.u32 683565275, %v1293
        %v1297 = vshrl.u32 2475754826, %v1294
        %v1298 = vor.u32 %v1296, %v1297
        %v1299 = vshll.u32 2475754826, %v1293
        %v1300 = vshrl.u32 2131351028, %v1294
        %v1301 = vor.u32 %v1299, %v1300
        %v1302 = vshll.u32 2131351028, %v1293
        %v1303 = vshrl.u32 2102212464, %v1294
        %v1304 = vor.u32 %v1302, %v1303
        %v1305 = vshll.u32 2102212464, %v1293
        %v1306 = vshrl.u32 920167782, %v1294
        %v1307 = vor.u32 %v1305, %v1306
        %v1308 = vshll.u32 920167782, %v1293
        %v1309 = vshrl.u32 1326507024, %v1294
        %v1310 = vor.u32 %v1308, %v1309
        %vm1311 = vcmp.lt.s32.totalorder %v1292, 1
        %vm1312 = vcmp.lt.s32.totalorder %v1292, 2
        %vm1313 = vcmp.lt.s32.totalorder %v1292, 3
        %vm1314 = vcmp.lt.s32.totalorder %v1292, 4
        %v1315 = vsel %vm1311, %v1295, %v1298
        %v1316 = vsel %vm1314, %v1304, 2102212464
        %v1317 = vsel %vm1313, %v1301, %v1316
        %v1318 = vsel %vm1312, %v1315, %v1317
        %v1319 = vsel %vm1311, %v1298, %v1301
        %v1320 = vsel %vm1314, %v1307, 920167782
        %v1321 = vsel %vm1313, %v1304, %v1320
        %v1322 = vsel %vm1312, %v1319, %v1321
        %v1323 = vsel %vm1311, %v1301, %v1304
        %v1324 = vsel %vm1314, %v1310, 1326507024
        %v1325 = vsel %vm1313, %v1307, %v1324
        %v1326 = vsel %vm1312, %v1323, %v1325
        %v1327 = vshll.u32 %v1287, 8
        %v1328 = vand.u32 %v1327, 65535
        %v1329 = vshrl.u32 %v1327, 16
        %v1330 = vand.u32 %v1326, 65535
        %v1331 = vshrl.u32 %v1326, 16
        %v1332 = vmul.u32 %v1328, %v1330
        %v1333 = vmul.u32 %v1328, %v1331
        %v1334 = vmul.u32 %v1329, %v1330
        %v1335 = vmul.u32 %v1329, %v1331
        %v1336 = vshll.u32 %v1333, 16
        %v1337 = vshrl.u32 %v1333, 16
        %v1338 = vshll.u32 %v1334, 16
        %v1339 = vshrl.u32 %v1334, 16
        %vm1340 = vc.u32 %v1332, %v1336
        %v1341 = vsel %vm1340, 1, 0
        %v1342 = vadd.s32 %v1332, %v1336
        %v1343 = vadd.s32 %v1335, %v1341
        %vm1344 = vc.u32 %v1342, %v1338
        %v1345 = vsel %vm1344, 1, 0
        %v1346 = vadd.s32 %v1342, %v1338
        %v1347 = vadd.s32 %v1343, %v1345
        %v1348 = vadd.s32 %v1347, %v1337
        %v1349 = vadd.s32 %v1348, %v1339
        %v1350 = vand.u32 %v1327, 65535
        %v1351 = vshrl.u32 %v1327, 16
        %v1352 = vand.u32 %v1322, 65535
        %v1353 = vshrl.u32 %v1322, 16
        %v1354 = vmul.u32 %v1350, %v1352
        %v1355 = vmul.u32 %v1350, %v1353
        %v1356 = vmul.u32 %v1351, %v1352
        %v1357 = vmul.u32 %v1351, %v1353
        %v1358 = vshll.u32 %v1355, 16
        %v1359 = vshrl.u32 %v1355, 16
        %v1360 = vshll.u32 %v1356, 16
        %v1361 = vshrl.u32 %v1356, 16
        %vm1362 = vc.u32 %v1354, %v1358
        %v1363 = vsel %vm1362, 1, 0
        %v1364 = vadd.s32 %v1354, %v1358
        %v1365 = vadd.s32 %v1357, %v1363
        %vm1366 = vc.u32 %v1364, %v1360
        %v1367 = vsel %vm1366, 1, 0
        %v1368 = vadd.s32 %v1364, %v1360
        %v1369 = vadd.s32 %v1365, %v1367
        %v1370 = vadd.s32 %v1369, %v1359
        %v1371 = vadd.s32 %v1370, %v1361
        %v1372 = vmul.u32 %v1327, %v1318
        %v1373 = vadd.s32 %v1349, %v1368
        %vm1374 = vc.u32 %v1349, %v1368
        %v1375 = vadd.s32 %v1371, 1
        %v1376 = vsel %vm1374, %v1375, %v1371
        %v1377 = vadd.s32 %v1372, %v1376
        %v1378 = vadd.s32 %v1377, 536870912
        %v1379 = vshrl.u32 %v1378, 30
        %v1380 = vshll.u32 %v1379, 30
        %v1381 = vsub.s32 %v1377, %v1380
        %vm1382 = vcmp.lt.s32.totalorder %v1381, 0
        %v1383 = vsub.s32 0, %v1381
        %v1384 = vsel %vm1382, %v1383, %v1381
        %v1385 = vclz %v1384
        %v1386 = vsub.s32 %v1385, 2
        %vm1387 = vcmp.gt.s32.totalorder 0, %v1386
        %v1388 = vsel %vm1387, 0, %v1386
        %v1389 = vsub.s32 32, %v1388
        %v1390 = vshll.u32 %v1381, %v1388
        %v1391 = vshrl.u32 %v1373, %v1389
        %v1392 = vor.u32 %v1390, %v1391
        %v1393 = vsub.s32 4294967266, %v1388
        %v1394 = vadd.s32 %v1393, 127
        %v1395 = vshll.u32 %v1394, 23
        %v1396 = vor.u32 4788187, %v1395
        %v1397 = vand.u32 2147483647, %v1396
        %v1399 = vcvt.s32.f32 %v1392
        %v1400 = vmul.f32 %v1399, %v1397
        %v1401 = vxor.u32 %v1400, 2147483648
        %v1402 = vsel %vm1281, %v1401, %v1400
        %v1403 = vsub.s32 4, %v1379
        %v1404 = vsel %vm1281, %v1403, %v1379
        %v1405 = vsel %vm1280, %v347, %v1402
        %v1406 = vsel %vm1280, 0, %v1404
        %v1407 = vmul.f32 %v1405, %v1405
        %v1408 = vmul.f32 %v1407, -0.001358992
        %v1409 = vadd.f32 %v1408, 0.041655596
        %v1410 = vmul.f32 %v1407, %v1409
        %v1411 = vadd.f32 %v1410, -0.4999988
        %v1412 = vmul.f32 %v1407, %v1411
        %v1413 = vadd.f32 1.0, %v1412
        %v1414 = vmul.f32 %v1405, %v1405
        %v1415 = vmul.f32 %v1414, -0.00019511016
        %v1416 = vadd.f32 %v1415, 0.008332121
        %v1417 = vmul.f32 %v1414, %v1416
        %v1418 = vadd.f32 %v1417, -0.16666654
        %v1419 = vmul.f32 %v1414, %v1418
        %v1420 = vadd.f32 %v1419, 1.0
        %v1421 = vmul.f32 %v1420, %v1405
        %vm1422 = vweird.f32 %v347
        %v1423 = vadd.s32 %v1406, 3
        %v1424 = vand.u32 %v1423, 3
        %vm1425 = vcmp.lt.s32.totalorder %v1424, 2
        %vm1426 = vcmp.eq.s32.totalorder %v1424, 0
        %v1427 = vxor.u32 %v1421, 2147483648
        %v1428 = vsel %vm1426, %v1413, %v1427
        %vm1429 = vcmp.eq.s32.totalorder %v1424, 2
        %v1430 = vxor.u32 %v1413, 2147483648
        %v1431 = vsel %vm1429, %v1430, %v1421
        %v1432 = vsel %vm1425, %v1428, %v1431
        %v1433 = vsel %vm1422, nan, %v1432
        %v1434 = vand.u32 2147483647, %v348
        %vm1435 = vcmp.le.f32.partialorder %v1434, 0.7853982
        %vm1436 = vcmp.lt.s32.totalorder %v348, 0
        %v1437 = vand.u32 %v348, 2139095040
        %v1438 = vshrl.u32 %v1437, 23
        %v1439 = vsub.s32 %v1438, 127
        %v1440 = vand.u32 2147483647, %v348
        %v1441 = vand.u32 %v1440, 8388607
        %v1442 = vor.u32 %v1441, 8388608
        %v1443 = vsub.s32 0, %v1442
        %v1444 = vadd.s32 %v1439, 1
        %vm1445 = vcmp.gt.s32.totalorder %v1444, 0
        %v1446 = vsel %vm1445, %v1444, 0
        %v1447 = vshrl.u32 %v1446, 5
        %v1448 = vand.u32 %v1446, 31
        %v1449 = vsub.s32 32, %v1448
        %v1450 = vshrl.u32 683565275, %v1449
        %v1451 = vshll.u32 683565275, %v1448
        %v1452 = vshrl.u32 2475754826, %v1449
        %v1453 = vor.u32 %v1451, %v1452
        %v1454 = vshll.u32 2475754826, %v1448
        %v1455 = vshrl.u32 2131351028, %v1449
        %v1456 = vor.u32 %v1454, %v1455
        %v1457 = vshll.u32 2131351028, %v1448
        %v1458 = vshrl.u32 2102212464, %v1449
        %v1459 = vor.u32 %v1457, %v1458
        %v1460 = vshll.u32 2102212464, %v1448
        %v1461 = vshrl.u32 920167782, %v1449
        %v1462 = vor.u32 %v1460, %v1461
        %v1463 = vshll.u32 920167782, %v1448
        %v1464 = vshrl.u32 1326507024, %v1449
        %v1465 = vor.u32 %v1463, %v1464
        %vm1466 = vcmp.lt.s32.totalorder %v1447, 1
        %vm1467 = vcmp.lt.s32.totalorder %v1447, 2
        %vm1468 = vcmp.lt.s32.totalorder %v1447, 3
        %vm1469 = vcmp.lt.s32.totalorder %v1447, 4
        %v1470 = vsel %vm1466, %v1450, %v1453
        %v1471 = vsel %vm1469, %v1459, 2102212464
        %v1472 = vsel %vm1468, %v1456, %v1471
        %v1473 = vsel %vm1467, %v1470, %v1472
        %v1474 = vsel %vm1466, %v1453, %v1456
        %v1475 = vsel %vm1469, %v1462, 920167782
        %v1476 = vsel %vm1468, %v1459, %v1475
        %v1477 = vsel %vm1467, %v1474, %v1476
        %v1478 = vsel %vm1466, %v1456, %v1459
        %v1479 = vsel %vm1469, %v1465, 1326507024
        %v1480 = vsel %vm1468, %v1462, %v1479
        %v1481 = vsel %vm1467, %v1478, %v1480
        %v1482 = vshll.u32 %v1442, 8
        %v1483 = vand.u32 %v1482, 65535
        %v1484 = vshrl.u32 %v1482, 16
        %v1485 = vand.u32 %v1481, 65535
        %v1486 = vshrl.u32 %v1481, 16
        %v1487 = vmul.u32 %v1483, %v1485
        %v1488 = vmul.u32 %v1483, %v1486
        %v1489 = vmul.u32 %v1484, %v1485
        %v1490 = vmul.u32 %v1484, %v1486
        %v1491 = vshll.u32 %v1488, 16
        %v1492 = vshrl.u32 %v1488, 16
        %v1493 = vshll.u32 %v1489, 16
        %v1494 = vshrl.u32 %v1489, 16
        %vm1495 = vc.u32 %v1487, %v1491
        %v1496 = vsel %vm1495, 1, 0
        %v1497 = vadd.s32 %v1487, %v1491
        %v1498 = vadd.s32 %v1490, %v1496
        %vm1499 = vc.u32 %v1497, %v1493
        %v1500 = vsel %vm1499, 1, 0
        %v1501 = vadd.s32 %v1497, %v1493
        %v1502 = vadd.s32 %v1498, %v1500
        %v1503 = vadd.s32 %v1502, %v1492
        %v1504 = vadd.s32 %v1503, %v1494
        %v1505 = vand.u32 %v1482, 65535
        %v1506 = vshrl.u32 %v1482, 16
        %v1507 = vand.u32 %v1477, 65535
        %v1508 = vshrl.u32 %v1477, 16
        %v1509 = vmul.u32 %v1505, %v1507
        %v1510 = vmul.u32 %v1505, %v1508
        %v1511 = vmul.u32 %v1506, %v1507
        %v1512 = vmul.u32 %v1506, %v1508
        %v1513 = vshll.u32 %v1510, 16
        %v1514 = vshrl.u32 %v1510, 16
        %v1515 = vshll.u32 %v1511, 16
        %v1516 = vshrl.u32 %v1511, 16
        %vm1517 = vc.u32 %v1509, %v1513
        %v1518 = vsel %vm1517, 1, 0
        %v1519 = vadd.s32 %v1509, %v1513
        %v1520 = vadd.s32 %v1512, %v1518
        %vm1521 = vc.u32 %v1519, %v1515
        %v1522 = vsel %vm1521, 1, 0
        %v1523 = vadd.s32 %v1519, %v1515
        %v1524 = vadd.s32 %v1520, %v1522
        %v1525 = vadd.s32 %v1524, %v1514
        %v1526 = vadd.s32 %v1525, %v1516
        %v1527 = vmul.u32 %v1482, %v1473
        %v1528 = vadd.s32 %v1504, %v1523
        %vm1529 = vc.u32 %v1504, %v1523
        %v1530 = vadd.s32 %v1526, 1
        %v1531 = vsel %vm1529, %v1530, %v1526
        %v1532 = vadd.s32 %v1527, %v1531
        %v1533 = vadd.s32 %v1532, 536870912
        %v1534 = vshrl.u32 %v1533, 30
        %v1535 = vshll.u32 %v1534, 30
        %v1536 = vsub.s32 %v1532, %v1535
        %vm1537 = vcmp.lt.s32.totalorder %v1536, 0
        %v1538 = vsub.s32 0, %v1536
        %v1539 = vsel %vm1537, %v1538, %v1536
        %v1540 = vclz %v1539
        %v1541 = vsub.s32 %v1540, 2
        %vm1542 = vcmp.gt.s32.totalorder 0, %v1541
        %v1543 = vsel %vm1542, 0, %v1541
        %v1544 = vsub.s32 32, %v1543
        %v1545 = vshll.u32 %v1536, %v1543
        %v1546 = vshrl.u32 %v1528, %v1544
        %v1547 = vor.u32 %v1545, %v1546
        %v1548 = vsub.s32 4294967266, %v1543
        %v1549 = vadd.s32 %v1548, 127
        %v1550 = vshll.u32 %v1549, 23
        %v1551 = vor.u32 4788187, %v1550
        %v1552 = vand.u32 2147483647, %v1551
        %v1554 = vcvt.s32.f32 %v1547
        %v1555 = vmul.f32 %v1554, %v1552
        %v1556 = vxor.u32 %v1555, 2147483648
        %v1557 = vsel %vm1436, %v1556, %v1555
        %v1558 = vsub.s32 4, %v1534
        %v1559 = vsel %vm1436, %v1558, %v1534
        %v1560 = vsel %vm1435, %v348, %v1557
        %v1561 = vsel %vm1435, 0, %v1559
        %v1562 = vmul.f32 %v1560, %v1560
        %v1563 = vmul.f32 %v1562, -0.001358992
        %v1564 = vadd.f32 %v1563, 0.041655596
        %v1565 = vmul.f32 %v1562, %v1564
        %v1566 = vadd.f32 %v1565, -0.4999988
        %v1567 = vmul.f32 %v1562, %v1566
        %v1568 = vadd.f32 1.0, %v1567
        %v1569 = vmul.f32 %v1560, %v1560
        %v1570 = vmul.f32 %v1569, -0.00019511016
        %v1571 = vadd.f32 %v1570, 0.008332121
        %v1572 = vmul.f32 %v1569, %v1571
        %v1573 = vadd.f32 %v1572, -0.16666654
        %v1574 = vmul.f32 %v1569, %v1573
        %v1575 = vadd.f32 %v1574, 1.0
        %v1576 = vmul.f32 %v1575, %v1560
        %vm1577 = vweird.f32 %v348
        %v1578 = vadd.s32 %v1561, 3
        %v1579 = vand.u32 %v1578, 3
        %vm1580 = vcmp.lt.s32.totalorder %v1579, 2
        %vm1581 = vcmp.eq.s32.totalorder %v1579, 0
        %v1582 = vxor.u32 %v1576, 2147483648
        %v1583 = vsel %vm1581, %v1568, %v1582
        %vm1584 = vcmp.eq.s32.totalorder %v1579, 2
        %v1585 = vxor.u32 %v1568, 2147483648
        %v1586 = vsel %vm1584, %v1585, %v1576
        %v1587 = vsel %vm1580, %v1583, %v1586
        %v1588 = vsel %vm1577, nan, %v1587
        %v1589 = vadd.f32 %v271, %v503
        %v1590 = vadd.f32 %v272, %v658
        %v1591 = vadd.f32 %v273, %v813
        %v1592 = vadd.f32 %v274, %v968
        %v1593 = vadd.f32 %v275, %v1123
        %v1594 = vadd.f32 %v276, %v1278
        %v1595 = vadd.f32 %v277, %v1433
        %v1596 = vadd.f32 %v278, %v1588
        %1597 = vst [vmem:[%s259] sm:$0xff] %v1589
        %1598 = vst [vmem:[%s259 + $0x8] sm:$0xff] %v1590
        %1599 = vst [vmem:[%s259 + $0x10] sm:$0xff] %v1591
        %1600 = vst [vmem:[%s259 + $0x18] sm:$0xff] %v1592
        %1601 = vst [vmem:[%s259 + $0x20] sm:$0xff] %v1593
        %1602 = vst [vmem:[%s259 + $0x28] sm:$0xff] %v1594
        %1603 = vst [vmem:[%s259 + $0x30] sm:$0xff] %v1595
        %1604 = vst [vmem:[%s259 + $0x38] sm:$0xff] %v1596
        %s1605 = sand.u32 %s141, 1
        %s1606 = scalar_lea.sflag [#allocation4], %s1605
        %s1607 = sand.u32 %s141, 1
        %s1608 = smul.addr %s1607, 64
        %s1609 = scalar_lea.vmem [#allocation5], %s1608
        // Predicated region
        $region41: #{tpu_custom_call.1} parent=35 // pred_check
          %p1610 = pneg %p151
        $region42: #{tpu_custom_call.1} parent=35 // pred_check_branch
          %1612 = sbr.rel (%p1610) target = $region44
        $region43: #{tpu_custom_call.1} parent=35 // pred_region
          %s1613 = smul.u32 2, %s26
          %1615 = vsyncadd %s1606, 0
          %s1616 = smul.addr %s25, 8
          %s1617 = sadd.s32 %s1613, %s1616
          %s1618 = smul.addr %s1617, 8
          %s1619 = scalar_lea.hbm %s4, %s1618
          %s1620 = sshll.u32 %s1609, 4
          %s1621 = int_to_ptr.vmem [resolvable:$true] %s1620
          %s1622 = sshll.u32 %s1619, 4
          %s1623 = int_to_ptr.hbm [resolvable:$true] %s1622
          %1628 = dma.vmem_to_hbm [thread:$0]  %s1621, 1024, %s1623, %s1606, 256, 256, 16
        $region44: #{tpu_custom_call.1} parent=35 // pred_fallthru
          _
      $region36: #{tpu_custom_call.1} parent=5 // pred_fallthru
        _
      %p1629 = scmp.le.s32.totalorder 2, %s16
      // Predicated region
      $region45: #{tpu_custom_call.1} parent=5 // pred_check
        %p1630 = pneg %p1629
      $region46: #{tpu_custom_call.1} parent=5 // pred_check_branch
        %1632 = sbr.rel (%p1630) target = $region48
      $region47: #{tpu_custom_call.1} parent=5 // pred_region
        %s1633 = ssub.s32 %s16, 2
        // Predicated region
        $region49: #{tpu_custom_call.1} parent=47 // pred_check
          %p1634 = pneg %p157
        $region50: #{tpu_custom_call.1} parent=47 // pred_check_branch
          %1636 = sbr.rel (%p1634) target = $region52
        $region51: #{tpu_custom_call.1} parent=47 // pred_region
          %s1637 = sand.u32 %s142, 1
          %s1638 = scalar_lea.sflag [#allocation4], %s1637
          %s1639 = sand.u32 %s142, 1
          %s1640 = smul.addr %s1639, 64
          %s1641 = scalar_lea.vmem [#allocation5], %s1640
          %1643 = dma.done %s1638, 1024
        $region52: #{tpu_custom_call.1} parent=47 // pred_fallthru
          _
      $region48: #{tpu_custom_call.1} parent=5 // pred_fallthru
        _
    $region6: #{tpu_custom_call.1} parent=1 // loop_footer
      %s20 = sadd.s32 1, %s16
    $region7: #{tpu_custom_call.1} parent=1 // loop_footer_branch
      %15 = sbr.rel target = $region3
    $region8: #{tpu_custom_call.1} parent=1 // loop_exit
      _
    %1644 = vsyncpa [#allocation3], 1
    %s1645 = scalar_lea.sflag [#allocation3], 1
    %1646 = vsyncpa %s1645, 1
    %1647 = vsyncpa [#allocation4], 1
    %s1648 = scalar_lea.sflag [#allocation4], 1
    %1649 = vsyncpa %s1648, 1

</llo_original>
